<compile_context>
chip_gen: v6e
topology: v6e:2x2x1
jax: 0.10.0
libtpu: 0.0.40
codegen_flags: <defaults>
</compile_context>

<pallas_src>
import numpy as np
import jax
import jax.numpy as jnp
from jax.experimental import pallas as pl
from jax.experimental.pallas import tpu as pltpu


def _round_up(x, m):
    return ((x + m - 1) // m) * m


def _lstm_layer_kernel(maxlen_ref, len_ref, x_ref, wih_ref, whh_ref, b_ref,
                       y_ref, hn_ref, cn_ref, h_sc, c_sc):
    """One LSTM layer, gridded over time chunks.

    maxlen_ref: SMEM (1,) int32      max(lengths); whole chunks past it skipped
    len_ref:    (Bp, 1) int32        per-sequence valid lengths (padded rows 0)
    x_ref:      (T_CHUNK, Bp, Ip)    time-major input chunk
    wih_ref:    (Ip, 4*Hp)           gate-blocked, lane-padded input weights
    whh_ref:    (Hp, 4*Hp)           gate-blocked recurrent weights
    b_ref:      (1, 4*Hp)            folded bias (b_ih + b_hh), gate-blocked
    y_ref:      (T_CHUNK, Bp, Hp)    output chunk (zero at padded positions)
    hn_ref/cn_ref: (Bp, Hp)          final (last-valid-step) states
    h_sc/c_sc:  (Bp, Hp) f32         persistent recurrence scratch
    """
    t_idx = pl.program_id(0)
    t_chunk, bp, _ = x_ref.shape
    hp = hn_ref.shape[-1]
    chunk_start = t_idx * t_chunk
    max_len = maxlen_ref[0]

    @pl.when(t_idx == 0)
    def _init():
        h_sc[...] = jnp.zeros(h_sc.shape, h_sc.dtype)
        c_sc[...] = jnp.zeros(c_sc.shape, c_sc.dtype)

    @pl.when(chunk_start >= max_len)
    def _skip():
        # Entire chunk is past every sequence's length: output zero, state kept.
        y_ref[...] = jnp.zeros(y_ref.shape, y_ref.dtype)

    @pl.when(chunk_start < max_len)
    def _compute():
        # ---- Phase 1: hoisted input projection for the whole chunk. ----
        # One (T_CHUNK*Bp, Ip) @ (Ip, 4*Hp) MXU matmul instead of T tiny
        # (Bp, Ip) matmuls inside the serial recurrence; bias folded in here.
        x2d = x_ref[...].reshape(t_chunk * bp, x_ref.shape[-1])
        w_ih = wih_ref[...]
        xproj = jnp.dot(x2d.astype(w_ih.dtype), w_ih,
                        preferred_element_type=jnp.float32) + b_ref[...]

        # ---- Phase 2: the (inherently serial) recurrence. ----
        # Loop-invariant loads hoisted; loop fully unrolled (T_CHUNK small and
        # static) so MXU pushes / EUP transcendentals / stores of adjacent
        # timesteps can interleave across bundle slots.
        w_hh = whh_ref[...]
        lens = len_ref[...]                        # (Bp, 1) int32
        h = h_sc[...]
        c = c_sc[...]
        for t in range(t_chunk):
            g = xproj[t * bp:(t + 1) * bp, :] + jnp.dot(
                h.astype(w_hh.dtype), w_hh, preferred_element_type=jnp.float32)
            # Gate blocks are lane-aligned (Hp is a multiple of 128), so these
            # slices are free static views.
            i_g = jax.nn.sigmoid(g[:, 0 * hp:1 * hp])
            f_g = jax.nn.sigmoid(g[:, 1 * hp:2 * hp])
            g_g = jnp.tanh(g[:, 2 * hp:3 * hp])
            o_g = jax.nn.sigmoid(g[:, 3 * hp:4 * hp])
            c_new = f_g * c + i_g * g_g
            h_new = o_g * jnp.tanh(c_new)

            mask = (chunk_start + t) < lens        # (Bp, 1) -> broadcast over Hp
            h = jnp.where(mask, h_new, h)
            c = jnp.where(mask, c_new, c)
            y_ref[t] = jnp.where(mask, h_new, jnp.zeros_like(h_new))
        h_sc[...] = h
        c_sc[...] = c

    hn_ref[...] = h_sc[...]
    cn_ref[...] = c_sc[...]


def _lstm_layer(x_tm, len2d, max_len, wih_p, whh_p, b_p, *, t_chunk):
    """x_tm: (T_pad, Bp, Ip) f32; weights padded & gate-blocked."""
    t_pad, bp, ip = x_tm.shape
    hp = whh_p.shape[0]
    num_chunks = t_pad // t_chunk

    # VMEM budget: double-buffered x/y chunks + weights + xproj + scratch,
    # with 2x headroom, clamped to stay inside v7x's 64 MiB physical VMEM.
    est = 4 * (2 * t_chunk * bp * (ip + hp)        # x + y chunks (double-buffered)
               + 2 * (ip + hp + 1) * 4 * hp        # W_ih, W_hh, bias buffers
               + t_chunk * bp * 4 * hp             # xproj intermediate
               + 6 * bp * hp)                      # h/c scratch + hn/cn buffers
    vmem_limit = int(min(max(2 * est, 8 << 20), 48 << 20))

    grid_spec = pltpu.PrefetchScalarGridSpec(
        num_scalar_prefetch=1,
        grid=(num_chunks,),
        in_specs=[
            pl.BlockSpec((bp, 1), lambda t, ml: (0, 0)),
            pl.BlockSpec((t_chunk, bp, ip), lambda t, ml: (t, 0, 0)),
            pl.BlockSpec((ip, 4 * hp), lambda t, ml: (0, 0)),
            pl.BlockSpec((hp, 4 * hp), lambda t, ml: (0, 0)),
            pl.BlockSpec((1, 4 * hp), lambda t, ml: (0, 0)),
        ],
        out_specs=(
            pl.BlockSpec((t_chunk, bp, hp), lambda t, ml: (t, 0, 0)),
            pl.BlockSpec((bp, hp), lambda t, ml: (0, 0)),
            pl.BlockSpec((bp, hp), lambda t, ml: (0, 0)),
        ),
        scratch_shapes=[pltpu.VMEM((bp, hp), jnp.float32),
                        pltpu.VMEM((bp, hp), jnp.float32)],
    )
    return pl.pallas_call(
        _lstm_layer_kernel,
        out_shape=(jax.ShapeDtypeStruct((t_pad, bp, hp), jnp.float32),
                   jax.ShapeDtypeStruct((bp, hp), jnp.float32),
                   jax.ShapeDtypeStruct((bp, hp), jnp.float32)),
        grid_spec=grid_spec,
        compiler_params=pltpu.CompilerParams(
            dimension_semantics=("arbitrary",),   # sequential recurrence in time
            vmem_limit_bytes=vmem_limit),
    )(max_len, len2d, x_tm, wih_p, whh_p, b_p)


class CustomLSTM:
    """JAX/Pallas equivalent of the PyTorch CustomLSTM (eval mode, uni-dir)."""

    def __init__(self, input_size, hidden_size, num_layers, dropout,
                 bidirectional=False, key=None, t_chunk=8,
                 matmul_dtype=jnp.float32):
        assert not bidirectional, "bidirectional=False in this synthetic kernel"
        self.input_size = input_size
        self.hidden_size = hidden_size
        self.hidden_pad = _round_up(hidden_size, 128)     # lane-dense H
        self.num_layers = num_layers
        self.dropout = dropout            # identity in eval mode
        self.t_chunk = t_chunk
        # On v6e/v7x set matmul_dtype=jnp.bfloat16 to halve weight VMEM and
        # double MXU throughput (f32 accumulation is kept either way).
        self.matmul_dtype = matmul_dtype

        k = 1.0 / np.sqrt(hidden_size)
        key = key if key is not None else jax.random.PRNGKey(0)
        self.raw_params = []      # PyTorch-layout weights (for reference impl)
        self.packed_params = []   # padded, gate-blocked kernel weights
        for layer in range(num_layers):
            in_sz = input_size if layer == 0 else hidden_size
            in_pad = _round_up(in_sz, 128) if layer == 0 else self.hidden_pad
            key, k1, k2, k3, k4 = jax.random.split(key, 5)
            w_ih = jax.random.uniform(k1, (4 * hidden_size, in_sz), jnp.float32, -k, k)
            w_hh = jax.random.uniform(k2, (4 * hidden_size, hidden_size), jnp.float32, -k, k)
            b_ih = jax.random.uniform(k3, (4 * hidden_size,), jnp.float32, -k, k)
            b_hh = jax.random.uniform(k4, (4 * hidden_size,), jnp.float32, -k, k)
            self.raw_params.append((w_ih, w_hh, b_ih, b_hh))
            self.packed_params.append(self._pack(w_ih, w_hh, b_ih + b_hh, in_sz, in_pad))

    def _pack(self, w_ih, w_hh, b, in_sz, in_pad):
        """Transpose, zero-pad and gate-block weights so each gate's block is a
        lane-aligned, 128-multiple slab (gate order i, f, g, o kept)."""
        H, Hp = self.hidden_size, self.hidden_pad
        w_ih_t = np.asarray(w_ih).T                       # (in_sz, 4H)
        w_hh_t = np.asarray(w_hh).T                       # (H, 4H)
        b = np.asarray(b)
        wih_p = np.zeros((in_pad, 4 * Hp), np.float32)
        whh_p = np.zeros((Hp, 4 * Hp), np.float32)
        b_p = np.zeros((1, 4 * Hp), np.float32)
        for g in range(4):
            wih_p[:in_sz, g * Hp:g * Hp + H] = w_ih_t[:, g * H:(g + 1) * H]
            whh_p[:H, g * Hp:g * Hp + H] = w_hh_t[:, g * H:(g + 1) * H]
            b_p[0, g * Hp:g * Hp + H] = b[g * H:(g + 1) * H]
        md = self.matmul_dtype
        return (jnp.asarray(wih_p).astype(md),
                jnp.asarray(whh_p).astype(md),
                jnp.asarray(b_p))

    def __call__(self, inputs, input_lengths, state=None):
        # inputs: (B, T, input_size), batch-first like PyTorch.
        assert state is None  # module is always called with default zero state
        B, T, I = inputs.shape
        H, Hp = self.hidden_size, self.hidden_pad
        Bp = _round_up(B, 8)                              # sublane-aligned batch
        T_pad = _round_up(T, self.t_chunk)
        in_pad0 = self.packed_params[0][0].shape[0]

        x_tm = jnp.transpose(inputs, (1, 0, 2)).astype(jnp.float32)   # (T, B, I)
        x_tm = jnp.pad(x_tm, ((0, T_pad - T), (0, Bp - B), (0, in_pad0 - I)))
        lengths = jnp.asarray(input_lengths, jnp.int32)
        len2d = jnp.pad(lengths.reshape(B, 1), ((0, Bp - B), (0, 0)))  # pad rows: len 0
        max_len = jnp.max(lengths).astype(jnp.int32).reshape(1)

        h_list, c_list = [], []
        layer_in = x_tm
        for (wih_p, whh_p, b_p) in self.packed_params:
            y_tm, h_n, c_n = _lstm_layer(layer_in, len2d, max_len,
                                         wih_p, whh_p, b_p, t_chunk=self.t_chunk)
            h_list.append(h_n[:B, :H])
            c_list.append(c_n[:B, :H])
            layer_in = y_tm           # inter-layer dropout: identity (eval mode)
        output = jnp.transpose(layer_in, (1, 0, 2))[:B, :T, :H]   # (B, T, H)
        # self.dropout(output): identity in eval mode.
        return output, (jnp.stack(h_list), jnp.stack(c_list))


def _numpy_reference(x, lengths, raw_params, hidden_size):
    """Plain numpy masked-LSTM reference (same packing semantics)."""
    def sigmoid(z):
        return 1.0 / (1.0 + np.exp(-z))

    x = np.asarray(x, np.float32)
    B, T, _ = x.shape
    H = hidden_size
    layer_in = x
    h_ns, c_ns = [], []
    for (w_ih, w_hh, b_ih, b_hh) in raw_params:
        w_ih_t = np.asarray(w_ih).T
        w_hh_t = np.asarray(w_hh).T
        b = np.asarray(b_ih) + np.asarray(b_hh)
        h = np.zeros((B, H), np.float32)
        c = np.zeros((B, H), np.float32)
        y = np.zeros((B, T, H), np.float32)
        for t in range(T):
            gates = layer_in[:, t, :] @ w_ih_t + h @ w_hh_t + b
            i_g = sigmoid(gates[:, 0:H])
            f_g = sigmoid(gates[:, H:2 * H])
            g_g = np.tanh(gates[:, 2 * H:3 * H])
            o_g = sigmoid(gates[:, 3 * H:4 * H])
            c_new = f_g * c + i_g * g_g
            h_new = o_g * np.tanh(c_new)
            mask = (t < np.asarray(lengths))[:, None]
            h = np.where(mask, h_new, h)
            c = np.where(mask, c_new, c)
            y[:, t, :] = np.where(mask, h_new, 0.0)
        h_ns.append(h)
        c_ns.append(c)
        layer_in = y
    return layer_in, (np.stack(h_ns), np.stack(c_ns))


if __name__ == "__main__":
    B, T = 2, 8
    input_size, hidden_size, num_layers, dropout = 16, 32, 2, 0.1

    key = jax.random.PRNGKey(0)
    k_x, k_w = jax.random.split(key)
    x = jax.random.normal(k_x, (B, T, input_size), jnp.float32)
    lengths = jnp.array([T, 5], dtype=jnp.int32)

    model = CustomLSTM(input_size, hidden_size, num_layers, dropout,
                       bidirectional=False, key=k_w)

    output, (h_n, c_n) = model(x, lengths)
    output = jax.block_until_ready(output)
    h_n = jax.block_until_ready(h_n)
    c_n = jax.block_until_ready(c_n)

    ref_out, (ref_h, ref_c) = _numpy_reference(np.asarray(x), np.asarray(lengths),
                                               model.raw_params, hidden_size)
    np.testing.assert_allclose(np.asarray(output), ref_out, atol=1e-4, rtol=1e-4)
    np.testing.assert_allclose(np.asarray(h_n), ref_h, atol=1e-4, rtol=1e-4)
    np.testing.assert_allclose(np.asarray(c_n), ref_c, atol=1e-4, rtol=1e-4)

    assert output.shape == (B, T, hidden_size)
    assert h_n.shape == (num_layers, B, hidden_size)
    assert c_n.shape == (num_layers, B, hidden_size)
    print("KERNEL_OK")
</pallas_src>

<mosaic_0001>
module attributes {stable_mosaic.version = 11 : i64} {
  func.func @_lstm_layer_kernel(%arg0: i32, %arg1: memref<1xi32, #tpu.memory_space<smem>>, %arg2: memref<8x1xi32, #tpu.memory_space<vmem>>, %arg3: memref<8x8x128xf32, #tpu.memory_space<vmem>>, %arg4: memref<128x512xf32, #tpu.memory_space<vmem>>, %arg5: memref<128x512xf32, #tpu.memory_space<vmem>>, %arg6: memref<1x512xf32, #tpu.memory_space<vmem>>, %arg7: memref<8x8x128xf32, #tpu.memory_space<vmem>>, %arg8: memref<8x128xf32, #tpu.memory_space<vmem>>, %arg9: memref<8x128xf32, #tpu.memory_space<vmem>>, %arg10: memref<8x128xf32, #tpu.memory_space<vmem>>, %arg11: memref<8x128xf32, #tpu.memory_space<vmem>>) attributes {dimension_semantics = [#tpu.dimension_semantics<arbitrary>], iteration_bounds = array<i64: 1>, scalar_prefetch = 1 : i64, scratch_operands = 2 : i64, tpu.core_type = #tpu.core_type<tc>, window_params = [{pipeline_mode = #tpu.pipeline_mode<synchronous>, transform_indices = @transform_0, window_bounds = array<i64: 8, 1>}, {transform_indices = @transform_1, window_bounds = array<i64: 8, 8, 128>}, {pipeline_mode = #tpu.pipeline_mode<synchronous>, transform_indices = @transform_2, window_bounds = array<i64: 128, 512>}, {pipeline_mode = #tpu.pipeline_mode<synchronous>, transform_indices = @transform_3, window_bounds = array<i64: 128, 512>}, {pipeline_mode = #tpu.pipeline_mode<synchronous>, transform_indices = @transform_4, window_bounds = array<i64: 1, 512>}, {transform_indices = @transform_5, window_bounds = array<i64: 8, 8, 128>}, {pipeline_mode = #tpu.pipeline_mode<synchronous>, transform_indices = @transform_6, window_bounds = array<i64: 8, 128>}, {pipeline_mode = #tpu.pipeline_mode<synchronous>, transform_indices = @transform_7, window_bounds = array<i64: 8, 128>}]} {
    %c8_i32 = arith.constant 8 : i32
    %0 = arith.muli %arg0, %c8_i32 : i32
    %c0 = arith.constant 0 : index
    %1 = memref.load %arg1[%c0] : memref<1xi32, #tpu.memory_space<smem>>
    %c0_i32 = arith.constant 0 : i32
    %2 = arith.cmpi eq, %arg0, %c0_i32 : i32
    %3 = arith.extui %2 : i1 to i32
    %c0_i32_0 = arith.constant 0 : i32
    %4 = arith.cmpi ne, %3, %c0_i32_0 : i32
    scf.if %4 {
      %cst = arith.constant 0.000000e+00 : f32
      %15 = vector.broadcast %cst : f32 to vector<8x128xf32>
      %c0_11 = arith.constant 0 : index
      %c0_12 = arith.constant 0 : index
      %16 = vector.load %arg10[%c0_11, %c0_12] : memref<8x128xf32, #tpu.memory_space<vmem>>, vector<8x128xf32>
      tpu.vector_store %arg10[%c0_11, %c0_12], %15 {strides = array<i32>} : memref<8x128xf32, #tpu.memory_space<vmem>>, vector<8x128xf32>,
      %cst_13 = arith.constant 0.000000e+00 : f32
      %17 = vector.broadcast %cst_13 : f32 to vector<8x128xf32>
      %c0_14 = arith.constant 0 : index
      %c0_15 = arith.constant 0 : index
      %18 = vector.load %arg11[%c0_14, %c0_15] : memref<8x128xf32, #tpu.memory_space<vmem>>, vector<8x128xf32>
      tpu.vector_store %arg11[%c0_14, %c0_15], %17 {strides = array<i32>} : memref<8x128xf32, #tpu.memory_space<vmem>>, vector<8x128xf32>,
    } else {
    }
    %5 = arith.cmpi sge, %0, %1 : i32
    %6 = arith.extui %5 : i1 to i32
    %c0_i32_1 = arith.constant 0 : i32
    %7 = arith.cmpi ne, %6, %c0_i32_1 : i32
    scf.if %7 {
      %cst = arith.constant 0.000000e+00 : f32
      %15 = vector.broadcast %cst : f32 to vector<8x8x128xf32>
      %c0_11 = arith.constant 0 : index
      %c0_12 = arith.constant 0 : index
      %c0_13 = arith.constant 0 : index
      %16 = vector.load %arg7[%c0_11, %c0_12, %c0_13] : memref<8x8x128xf32, #tpu.memory_space<vmem>>, vector<8x8x128xf32>
      tpu.vector_store %arg7[%c0_11, %c0_12, %c0_13], %15 {strides = array<i32>} : memref<8x8x128xf32, #tpu.memory_space<vmem>>, vector<8x8x128xf32>,
    } else {
    }
    %8 = arith.cmpi slt, %0, %1 : i32
    %9 = arith.extui %8 : i1 to i32
    %c0_i32_2 = arith.constant 0 : i32
    %10 = arith.cmpi ne, %9, %c0_i32_2 : i32
    scf.if %10 {
      %c0_11 = arith.constant 0 : index
      %c0_12 = arith.constant 0 : index
      %c0_13 = arith.constant 0 : index
      %15 = vector.load %arg3[%c0_11, %c0_12, %c0_13] : memref<8x8x128xf32, #tpu.memory_space<vmem>>, vector<8x8x128xf32>
      %16 = vector.shape_cast %15 : vector<8x8x128xf32> to vector<64x128xf32>
      %c0_14 = arith.constant 0 : index
      %c0_15 = arith.constant 0 : index
      %17 = vector.load %arg4[%c0_14, %c0_15] : memref<128x512xf32, #tpu.memory_space<vmem>>, vector<128x512xf32>
      %cst = arith.constant dense<0.000000e+00> : vector<64x512xf32>
      %18 = tpu.matmul %16, %17, %cst {dimension_numbers = #tpu.dot_dimension_numbers<[1], [0], [0], [1], [0, 0, 1, 1], [], []>} : vector<64x128xf32>, vector<128x512xf32>, vector<64x512xf32> -> vector<64x512xf32>
      %c0_16 = arith.constant 0 : index
      %c0_17 = arith.constant 0 : index
      %19 = vector.load %arg6[%c0_16, %c0_17] : memref<1x512xf32, #tpu.memory_space<vmem>>, vector<1x512xf32>
      %20 = vector.broadcast %19 : vector<1x512xf32> to vector<64x512xf32>
      %21 = arith.addf %18, %20 : vector<64x512xf32>
      %c0_18 = arith.constant 0 : index
      %c0_19 = arith.constant 0 : index
      %22 = vector.load %arg5[%c0_18, %c0_19] : memref<128x512xf32, #tpu.memory_space<vmem>>, vector<128x512xf32>
      %c0_20 = arith.constant 0 : index
      %c0_21 = arith.constant 0 : index
      %23 = vector.load %arg2[%c0_20, %c0_21] : memref<8x1xi32, #tpu.memory_space<vmem>>, vector<8x1xi32>
      %c0_22 = arith.constant 0 : index
      %c0_23 = arith.constant 0 : index
      %24 = vector.load %arg10[%c0_22, %c0_23] : memref<8x128xf32, #tpu.memory_space<vmem>>, vector<8x128xf32>
      %c0_24 = arith.constant 0 : index
      %c0_25 = arith.constant 0 : index
      %25 = vector.load %arg11[%c0_24, %c0_25] : memref<8x128xf32, #tpu.memory_space<vmem>>, vector<8x128xf32>
      %26 = vector.extract_strided_slice %21 {offsets = [0, 0], sizes = [8, 512], strides = [1, 1]} : vector<64x512xf32> to vector<8x512xf32>
      %cst_26 = arith.constant dense<0.000000e+00> : vector<8x512xf32>
      %27 = tpu.matmul %24, %22, %cst_26 {dimension_numbers = #tpu.dot_dimension_numbers<[1], [0], [0], [1], [0, 0, 1, 1], [], []>} : vector<8x128xf32>, vector<128x512xf32>, vector<8x512xf32> -> vector<8x512xf32>
      %28 = arith.addf %26, %27 : vector<8x512xf32>
      %29 = vector.extract_strided_slice %28 {offsets = [0, 0], sizes = [8, 128], strides = [1, 1]} : vector<8x512xf32> to vector<8x128xf32>
      %30 = arith.negf %29 : vector<8x128xf32>
      %31 = math.exp %30 : vector<8x128xf32>
      %cst_27 = arith.constant 1.000000e+00 : f32
      %32 = vector.broadcast %cst_27 : f32 to vector<8x128xf32>
      %33 = arith.addf %32, %31 : vector<8x128xf32>
      %34 = arith.divf %32, %33 : vector<8x128xf32>
      %35 = vector.extract_strided_slice %28 {offsets = [0, 128], sizes = [8, 128], strides = [1, 1]} : vector<8x512xf32> to vector<8x128xf32>
      %36 = arith.negf %35 : vector<8x128xf32>
      %37 = math.exp %36 : vector<8x128xf32>
      %cst_28 = arith.constant 1.000000e+00 : f32
      %38 = vector.broadcast %cst_28 : f32 to vector<8x128xf32>
      %39 = arith.addf %38, %37 : vector<8x128xf32>
      %40 = arith.divf %38, %39 : vector<8x128xf32>
      %41 = vector.extract_strided_slice %28 {offsets = [0, 256], sizes = [8, 128], strides = [1, 1]} : vector<8x512xf32> to vector<8x128xf32>
      %42 = math.tanh %41 : vector<8x128xf32>
      %43 = vector.extract_strided_slice %28 {offsets = [0, 384], sizes = [8, 128], strides = [1, 1]} : vector<8x512xf32> to vector<8x128xf32>
      %44 = arith.negf %43 : vector<8x128xf32>
      %45 = math.exp %44 : vector<8x128xf32>
      %cst_29 = arith.constant 1.000000e+00 : f32
      %46 = vector.broadcast %cst_29 : f32 to vector<8x128xf32>
      %47 = arith.addf %46, %45 : vector<8x128xf32>
      %48 = arith.divf %46, %47 : vector<8x128xf32>
      %49 = arith.mulf %40, %25 : vector<8x128xf32>
      %50 = arith.mulf %34, %42 : vector<8x128xf32>
      %51 = arith.addf %49, %50 : vector<8x128xf32>
      %52 = math.tanh %51 : vector<8x128xf32>
      %53 = arith.mulf %48, %52 : vector<8x128xf32>
      %c0_i32_30 = arith.constant 0 : i32
      %54 = arith.addi %0, %c0_i32_30 : i32
      %55 = vector.broadcast %54 : i32 to vector<8x1xi32>
      %56 = arith.cmpi slt, %55, %23 : vector<8x1xi32>
      %57 = vector.shape_cast %56 : vector<8x1xi1> to vector<8x1xi1>
      %58 = vector.broadcast %57 : vector<8x1xi1> to vector<8x128xi1>
      %59 = arith.select %58, %53, %24 : vector<8x128xi1>, vector<8x128xf32>
      %60 = vector.shape_cast %56 : vector<8x1xi1> to vector<8x1xi1>
      %61 = vector.broadcast %60 : vector<8x1xi1> to vector<8x128xi1>
      %62 = arith.select %61, %51, %25 : vector<8x128xi1>, vector<8x128xf32>
      %cst_31 = arith.constant 0.000000e+00 : f32
      %63 = vector.broadcast %cst_31 : f32 to vector<8x128xf32>
      %64 = vector.shape_cast %56 : vector<8x1xi1> to vector<8x1xi1>
      %65 = vector.broadcast %64 : vector<8x1xi1> to vector<8x128xi1>
      %66 = arith.select %65, %53, %63 : vector<8x128xi1>, vector<8x128xf32>
      %c0_32 = arith.constant 0 : index
      %c0_33 = arith.constant 0 : index
      %c0_34 = arith.constant 0 : index
      %67 = vector.load %arg7[%c0_32, %c0_33, %c0_34] : memref<8x8x128xf32, #tpu.memory_space<vmem>>, vector<1x8x128xf32>
      %68 = vector.shape_cast %67 : vector<1x8x128xf32> to vector<8x128xf32>
      %69 = vector.shape_cast %66 : vector<8x128xf32> to vector<1x8x128xf32>
      tpu.vector_store %arg7[%c0_32, %c0_33, %c0_34], %69 {strides = array<i32>} : memref<8x8x128xf32, #tpu.memory_space<vmem>>, vector<1x8x128xf32>,
      %70 = vector.extract_strided_slice %21 {offsets = [8, 0], sizes = [8, 512], strides = [1, 1]} : vector<64x512xf32> to vector<8x512xf32>
      %cst_35 = arith.constant dense<0.000000e+00> : vector<8x512xf32>
      %71 = tpu.matmul %59, %22, %cst_35 {dimension_numbers = #tpu.dot_dimension_numbers<[1], [0], [0], [1], [0, 0, 1, 1], [], []>} : vector<8x128xf32>, vector<128x512xf32>, vector<8x512xf32> -> vector<8x512xf32>
      %72 = arith.addf %70, %71 : vector<8x512xf32>
      %73 = vector.extract_strided_slice %72 {offsets = [0, 0], sizes = [8, 128], strides = [1, 1]} : vector<8x512xf32> to vector<8x128xf32>
      %74 = arith.negf %73 : vector<8x128xf32>
      %75 = math.exp %74 : vector<8x128xf32>
      %cst_36 = arith.constant 1.000000e+00 : f32
      %76 = vector.broadcast %cst_36 : f32 to vector<8x128xf32>
      %77 = arith.addf %76, %75 : vector<8x128xf32>
      %78 = arith.divf %76, %77 : vector<8x128xf32>
      %79 = vector.extract_strided_slice %72 {offsets = [0, 128], sizes = [8, 128], strides = [1, 1]} : vector<8x512xf32> to vector<8x128xf32>
      %80 = arith.negf %79 : vector<8x128xf32>
      %81 = math.exp %80 : vector<8x128xf32>
      %cst_37 = arith.constant 1.000000e+00 : f32
      %82 = vector.broadcast %cst_37 : f32 to vector<8x128xf32>
      %83 = arith.addf %82, %81 : vector<8x128xf32>
      %84 = arith.divf %82, %83 : vector<8x128xf32>
      %85 = vector.extract_strided_slice %72 {offsets = [0, 256], sizes = [8, 128], strides = [1, 1]} : vector<8x512xf32> to vector<8x128xf32>
      %86 = math.tanh %85 : vector<8x128xf32>
      %87 = vector.extract_strided_slice %72 {offsets = [0, 384], sizes = [8, 128], strides = [1, 1]} : vector<8x512xf32> to vector<8x128xf32>
      %88 = arith.negf %87 : vector<8x128xf32>
      %89 = math.exp %88 : vector<8x128xf32>
      %cst_38 = arith.constant 1.000000e+00 : f32
      %90 = vector.broadcast %cst_38 : f32 to vector<8x128xf32>
      %91 = arith.addf %90, %89 : vector<8x128xf32>
      %92 = arith.divf %90, %91 : vector<8x128xf32>
      %93 = arith.mulf %84, %62 : vector<8x128xf32>
      %94 = arith.mulf %78, %86 : vector<8x128xf32>
      %95 = arith.addf %93, %94 : vector<8x128xf32>
      %96 = math.tanh %95 : vector<8x128xf32>
      %97 = arith.mulf %92, %96 : vector<8x128xf32>
      %c1_i32 = arith.constant 1 : i32
      %98 = arith.addi %0, %c1_i32 : i32
      %99 = vector.broadcast %98 : i32 to vector<8x1xi32>
      %100 = arith.cmpi slt, %99, %23 : vector<8x1xi32>
      %101 = vector.shape_cast %100 : vector<8x1xi1> to vector<8x1xi1>
      %102 = vector.broadcast %101 : vector<8x1xi1> to vector<8x128xi1>
      %103 = arith.select %102, %97, %59 : vector<8x128xi1>, vector<8x128xf32>
      %104 = vector.shape_cast %100 : vector<8x1xi1> to vector<8x1xi1>
      %105 = vector.broadcast %104 : vector<8x1xi1> to vector<8x128xi1>
      %106 = arith.select %105, %95, %62 : vector<8x128xi1>, vector<8x128xf32>
      %cst_39 = arith.constant 0.000000e+00 : f32
      %107 = vector.broadcast %cst_39 : f32 to vector<8x128xf32>
      %108 = vector.shape_cast %100 : vector<8x1xi1> to vector<8x1xi1>
      %109 = vector.broadcast %108 : vector<8x1xi1> to vector<8x128xi1>
      %110 = arith.select %109, %97, %107 : vector<8x128xi1>, vector<8x128xf32>
      %c1 = arith.constant 1 : index
      %c0_40 = arith.constant 0 : index
      %c0_41 = arith.constant 0 : index
      %111 = vector.load %arg7[%c1, %c0_40, %c0_41] : memref<8x8x128xf32, #tpu.memory_space<vmem>>, vector<1x8x128xf32>
      %112 = vector.shape_cast %111 : vector<1x8x128xf32> to vector<8x128xf32>
      %113 = vector.shape_cast %110 : vector<8x128xf32> to vector<1x8x128xf32>
      tpu.vector_store %arg7[%c1, %c0_40, %c0_41], %113 {strides = array<i32>} : memref<8x8x128xf32, #tpu.memory_space<vmem>>, vector<1x8x128xf32>,
      %114 = vector.extract_strided_slice %21 {offsets = [16, 0], sizes = [8, 512], strides = [1, 1]} : vector<64x512xf32> to vector<8x512xf32>
      %cst_42 = arith.constant dense<0.000000e+00> : vector<8x512xf32>
      %115 = tpu.matmul %103, %22, %cst_42 {dimension_numbers = #tpu.dot_dimension_numbers<[1], [0], [0], [1], [0, 0, 1, 1], [], []>} : vector<8x128xf32>, vector<128x512xf32>, vector<8x512xf32> -> vector<8x512xf32>
      %116 = arith.addf %114, %115 : vector<8x512xf32>
      %117 = vector.extract_strided_slice %116 {offsets = [0, 0], sizes = [8, 128], strides = [1, 1]} : vector<8x512xf32> to vector<8x128xf32>
      %118 = arith.negf %117 : vector<8x128xf32>
      %119 = math.exp %118 : vector<8x128xf32>
      %cst_43 = arith.constant 1.000000e+00 : f32
      %120 = vector.broadcast %cst_43 : f32 to vector<8x128xf32>
      %121 = arith.addf %120, %119 : vector<8x128xf32>
      %122 = arith.divf %120, %121 : vector<8x128xf32>
      %123 = vector.extract_strided_slice %116 {offsets = [0, 128], sizes = [8, 128], strides = [1, 1]} : vector<8x512xf32> to vector<8x128xf32>
      %124 = arith.negf %123 : vector<8x128xf32>
      %125 = math.exp %124 : vector<8x128xf32>
      %cst_44 = arith.constant 1.000000e+00 : f32
      %126 = vector.broadcast %cst_44 : f32 to vector<8x128xf32>
      %127 = arith.addf %126, %125 : vector<8x128xf32>
      %128 = arith.divf %126, %127 : vector<8x128xf32>
      %129 = vector.extract_strided_slice %116 {offsets = [0, 256], sizes = [8, 128], strides = [1, 1]} : vector<8x512xf32> to vector<8x128xf32>
      %130 = math.tanh %129 : vector<8x128xf32>
      %131 = vector.extract_strided_slice %116 {offsets = [0, 384], sizes = [8, 128], strides = [1, 1]} : vector<8x512xf32> to vector<8x128xf32>
      %132 = arith.negf %131 : vector<8x128xf32>
      %133 = math.exp %132 : vector<8x128xf32>
      %cst_45 = arith.constant 1.000000e+00 : f32
      %134 = vector.broadcast %cst_45 : f32 to vector<8x128xf32>
      %135 = arith.addf %134, %133 : vector<8x128xf32>
      %136 = arith.divf %134, %135 : vector<8x128xf32>
      %137 = arith.mulf %128, %106 : vector<8x128xf32>
      %138 = arith.mulf %122, %130 : vector<8x128xf32>
      %139 = arith.addf %137, %138 : vector<8x128xf32>
      %140 = math.tanh %139 : vector<8x128xf32>
      %141 = arith.mulf %136, %140 : vector<8x128xf32>
      %c2_i32 = arith.constant 2 : i32
      %142 = arith.addi %0, %c2_i32 : i32
      %143 = vector.broadcast %142 : i32 to vector<8x1xi32>
      %144 = arith.cmpi slt, %143, %23 : vector<8x1xi32>
      %145 = vector.shape_cast %144 : vector<8x1xi1> to vector<8x1xi1>
      %146 = vector.broadcast %145 : vector<8x1xi1> to vector<8x128xi1>
      %147 = arith.select %146, %141, %103 : vector<8x128xi1>, vector<8x128xf32>
      %148 = vector.shape_cast %144 : vector<8x1xi1> to vector<8x1xi1>
      %149 = vector.broadcast %148 : vector<8x1xi1> to vector<8x128xi1>
      %150 = arith.select %149, %139, %106 : vector<8x128xi1>, vector<8x128xf32>
      %cst_46 = arith.constant 0.000000e+00 : f32
      %151 = vector.broadcast %cst_46 : f32 to vector<8x128xf32>
      %152 = vector.shape_cast %144 : vector<8x1xi1> to vector<8x1xi1>
      %153 = vector.broadcast %152 : vector<8x1xi1> to vector<8x128xi1>
      %154 = arith.select %153, %141, %151 : vector<8x128xi1>, vector<8x128xf32>
      %c2 = arith.constant 2 : index
      %c0_47 = arith.constant 0 : index
      %c0_48 = arith.constant 0 : index
      %155 = vector.load %arg7[%c2, %c0_47, %c0_48] : memref<8x8x128xf32, #tpu.memory_space<vmem>>, vector<1x8x128xf32>
      %156 = vector.shape_cast %155 : vector<1x8x128xf32> to vector<8x128xf32>
      %157 = vector.shape_cast %154 : vector<8x128xf32> to vector<1x8x128xf32>
      tpu.vector_store %arg7[%c2, %c0_47, %c0_48], %157 {strides = array<i32>} : memref<8x8x128xf32, #tpu.memory_space<vmem>>, vector<1x8x128xf32>,
      %158 = vector.extract_strided_slice %21 {offsets = [24, 0], sizes = [8, 512], strides = [1, 1]} : vector<64x512xf32> to vector<8x512xf32>
      %cst_49 = arith.constant dense<0.000000e+00> : vector<8x512xf32>
      %159 = tpu.matmul %147, %22, %cst_49 {dimension_numbers = #tpu.dot_dimension_numbers<[1], [0], [0], [1], [0, 0, 1, 1], [], []>} : vector<8x128xf32>, vector<128x512xf32>, vector<8x512xf32> -> vector<8x512xf32>
      %160 = arith.addf %158, %159 : vector<8x512xf32>
      %161 = vector.extract_strided_slice %160 {offsets = [0, 0], sizes = [8, 128], strides = [1, 1]} : vector<8x512xf32> to vector<8x128xf32>
      %162 = arith.negf %161 : vector<8x128xf32>
      %163 = math.exp %162 : vector<8x128xf32>
      %cst_50 = arith.constant 1.000000e+00 : f32
      %164 = vector.broadcast %cst_50 : f32 to vector<8x128xf32>
      %165 = arith.addf %164, %163 : vector<8x128xf32>
      %166 = arith.divf %164, %165 : vector<8x128xf32>
      %167 = vector.extract_strided_slice %160 {offsets = [0, 128], sizes = [8, 128], strides = [1, 1]} : vector<8x512xf32> to vector<8x128xf32>
      %168 = arith.negf %167 : vector<8x128xf32>
      %169 = math.exp %168 : vector<8x128xf32>
      %cst_51 = arith.constant 1.000000e+00 : f32
      %170 = vector.broadcast %cst_51 : f32 to vector<8x128xf32>
      %171 = arith.addf %170, %169 : vector<8x128xf32>
      %172 = arith.divf %170, %171 : vector<8x128xf32>
      %173 = vector.extract_strided_slice %160 {offsets = [0, 256], sizes = [8, 128], strides = [1, 1]} : vector<8x512xf32> to vector<8x128xf32>
      %174 = math.tanh %173 : vector<8x128xf32>
      %175 = vector.extract_strided_slice %160 {offsets = [0, 384], sizes = [8, 128], strides = [1, 1]} : vector<8x512xf32> to vector<8x128xf32>
      %176 = arith.negf %175 : vector<8x128xf32>
      %177 = math.exp %176 : vector<8x128xf32>
      %cst_52 = arith.constant 1.000000e+00 : f32
      %178 = vector.broadcast %cst_52 : f32 to vector<8x128xf32>
      %179 = arith.addf %178, %177 : vector<8x128xf32>
      %180 = arith.divf %178, %179 : vector<8x128xf32>
      %181 = arith.mulf %172, %150 : vector<8x128xf32>
      %182 = arith.mulf %166, %174 : vector<8x128xf32>
      %183 = arith.addf %181, %182 : vector<8x128xf32>
      %184 = math.tanh %183 : vector<8x128xf32>
      %185 = arith.mulf %180, %184 : vector<8x128xf32>
      %c3_i32 = arith.constant 3 : i32
      %186 = arith.addi %0, %c3_i32 : i32
      %187 = vector.broadcast %186 : i32 to vector<8x1xi32>
      %188 = arith.cmpi slt, %187, %23 : vector<8x1xi32>
      %189 = vector.shape_cast %188 : vector<8x1xi1> to vector<8x1xi1>
      %190 = vector.broadcast %189 : vector<8x1xi1> to vector<8x128xi1>
      %191 = arith.select %190, %185, %147 : vector<8x128xi1>, vector<8x128xf32>
      %192 = vector.shape_cast %188 : vector<8x1xi1> to vector<8x1xi1>
      %193 = vector.broadcast %192 : vector<8x1xi1> to vector<8x128xi1>
      %194 = arith.select %193, %183, %150 : vector<8x128xi1>, vector<8x128xf32>
      %cst_53 = arith.constant 0.000000e+00 : f32
      %195 = vector.broadcast %cst_53 : f32 to vector<8x128xf32>
      %196 = vector.shape_cast %188 : vector<8x1xi1> to vector<8x1xi1>
      %197 = vector.broadcast %196 : vector<8x1xi1> to vector<8x128xi1>
      %198 = arith.select %197, %185, %195 : vector<8x128xi1>, vector<8x128xf32>
      %c3 = arith.constant 3 : index
      %c0_54 = arith.constant 0 : index
      %c0_55 = arith.constant 0 : index
      %199 = vector.load %arg7[%c3, %c0_54, %c0_55] : memref<8x8x128xf32, #tpu.memory_space<vmem>>, vector<1x8x128xf32>
      %200 = vector.shape_cast %199 : vector<1x8x128xf32> to vector<8x128xf32>
      %201 = vector.shape_cast %198 : vector<8x128xf32> to vector<1x8x128xf32>
      tpu.vector_store %arg7[%c3, %c0_54, %c0_55], %201 {strides = array<i32>} : memref<8x8x128xf32, #tpu.memory_space<vmem>>, vector<1x8x128xf32>,
      %202 = vector.extract_strided_slice %21 {offsets = [32, 0], sizes = [8, 512], strides = [1, 1]} : vector<64x512xf32> to vector<8x512xf32>
      %cst_56 = arith.constant dense<0.000000e+00> : vector<8x512xf32>
      %203 = tpu.matmul %191, %22, %cst_56 {dimension_numbers = #tpu.dot_dimension_numbers<[1], [0], [0], [1], [0, 0, 1, 1], [], []>} : vector<8x128xf32>, vector<128x512xf32>, vector<8x512xf32> -> vector<8x512xf32>
      %204 = arith.addf %202, %203 : vector<8x512xf32>
      %205 = vector.extract_strided_slice %204 {offsets = [0, 0], sizes = [8, 128], strides = [1, 1]} : vector<8x512xf32> to vector<8x128xf32>
      %206 = arith.negf %205 : vector<8x128xf32>
      %207 = math.exp %206 : vector<8x128xf32>
      %cst_57 = arith.constant 1.000000e+00 : f32
      %208 = vector.broadcast %cst_57 : f32 to vector<8x128xf32>
      %209 = arith.addf %208, %207 : vector<8x128xf32>
      %210 = arith.divf %208, %209 : vector<8x128xf32>
      %211 = vector.extract_strided_slice %204 {offsets = [0, 128], sizes = [8, 128], strides = [1, 1]} : vector<8x512xf32> to vector<8x128xf32>
      %212 = arith.negf %211 : vector<8x128xf32>
      %213 = math.exp %212 : vector<8x128xf32>
      %cst_58 = arith.constant 1.000000e+00 : f32
      %214 = vector.broadcast %cst_58 : f32 to vector<8x128xf32>
      %215 = arith.addf %214, %213 : vector<8x128xf32>
      %216 = arith.divf %214, %215 : vector<8x128xf32>
      %217 = vector.extract_strided_slice %204 {offsets = [0, 256], sizes = [8, 128], strides = [1, 1]} : vector<8x512xf32> to vector<8x128xf32>
      %218 = math.tanh %217 : vector<8x128xf32>
      %219 = vector.extract_strided_slice %204 {offsets = [0, 384], sizes = [8, 128], strides = [1, 1]} : vector<8x512xf32> to vector<8x128xf32>
      %220 = arith.negf %219 : vector<8x128xf32>
      %221 = math.exp %220 : vector<8x128xf32>
      %cst_59 = arith.constant 1.000000e+00 : f32
      %222 = vector.broadcast %cst_59 : f32 to vector<8x128xf32>
      %223 = arith.addf %222, %221 : vector<8x128xf32>
      %224 = arith.divf %222, %223 : vector<8x128xf32>
      %225 = arith.mulf %216, %194 : vector<8x128xf32>
      %226 = arith.mulf %210, %218 : vector<8x128xf32>
      %227 = arith.addf %225, %226 : vector<8x128xf32>
      %228 = math.tanh %227 : vector<8x128xf32>
      %229 = arith.mulf %224, %228 : vector<8x128xf32>
      %c4_i32 = arith.constant 4 : i32
      %230 = arith.addi %0, %c4_i32 : i32
      %231 = vector.broadcast %230 : i32 to vector<8x1xi32>
      %232 = arith.cmpi slt, %231, %23 : vector<8x1xi32>
      %233 = vector.shape_cast %232 : vector<8x1xi1> to vector<8x1xi1>
      %234 = vector.broadcast %233 : vector<8x1xi1> to vector<8x128xi1>
      %235 = arith.select %234, %229, %191 : vector<8x128xi1>, vector<8x128xf32>
      %236 = vector.shape_cast %232 : vector<8x1xi1> to vector<8x1xi1>
      %237 = vector.broadcast %236 : vector<8x1xi1> to vector<8x128xi1>
      %238 = arith.select %237, %227, %194 : vector<8x128xi1>, vector<8x128xf32>
      %cst_60 = arith.constant 0.000000e+00 : f32
      %239 = vector.broadcast %cst_60 : f32 to vector<8x128xf32>
      %240 = vector.shape_cast %232 : vector<8x1xi1> to vector<8x1xi1>
      %241 = vector.broadcast %240 : vector<8x1xi1> to vector<8x128xi1>
      %242 = arith.select %241, %229, %239 : vector<8x128xi1>, vector<8x128xf32>
      %c4 = arith.constant 4 : index
      %c0_61 = arith.constant 0 : index
      %c0_62 = arith.constant 0 : index
      %243 = vector.load %arg7[%c4, %c0_61, %c0_62] : memref<8x8x128xf32, #tpu.memory_space<vmem>>, vector<1x8x128xf32>
      %244 = vector.shape_cast %243 : vector<1x8x128xf32> to vector<8x128xf32>
      %245 = vector.shape_cast %242 : vector<8x128xf32> to vector<1x8x128xf32>
      tpu.vector_store %arg7[%c4, %c0_61, %c0_62], %245 {strides = array<i32>} : memref<8x8x128xf32, #tpu.memory_space<vmem>>, vector<1x8x128xf32>,
      %246 = vector.extract_strided_slice %21 {offsets = [40, 0], sizes = [8, 512], strides = [1, 1]} : vector<64x512xf32> to vector<8x512xf32>
      %cst_63 = arith.constant dense<0.000000e+00> : vector<8x512xf32>
      %247 = tpu.matmul %235, %22, %cst_63 {dimension_numbers = #tpu.dot_dimension_numbers<[1], [0], [0], [1], [0, 0, 1, 1], [], []>} : vector<8x128xf32>, vector<128x512xf32>, vector<8x512xf32> -> vector<8x512xf32>
      %248 = arith.addf %246, %247 : vector<8x512xf32>
      %249 = vector.extract_strided_slice %248 {offsets = [0, 0], sizes = [8, 128], strides = [1, 1]} : vector<8x512xf32> to vector<8x128xf32>
      %250 = arith.negf %249 : vector<8x128xf32>
      %251 = math.exp %250 : vector<8x128xf32>
      %cst_64 = arith.constant 1.000000e+00 : f32
      %252 = vector.broadcast %cst_64 : f32 to vector<8x128xf32>
      %253 = arith.addf %252, %251 : vector<8x128xf32>
      %254 = arith.divf %252, %253 : vector<8x128xf32>
      %255 = vector.extract_strided_slice %248 {offsets = [0, 128], sizes = [8, 128], strides = [1, 1]} : vector<8x512xf32> to vector<8x128xf32>
      %256 = arith.negf %255 : vector<8x128xf32>
      %257 = math.exp %256 : vector<8x128xf32>
      %cst_65 = arith.constant 1.000000e+00 : f32
      %258 = vector.broadcast %cst_65 : f32 to vector<8x128xf32>
      %259 = arith.addf %258, %257 : vector<8x128xf32>
      %260 = arith.divf %258, %259 : vector<8x128xf32>
      %261 = vector.extract_strided_slice %248 {offsets = [0, 256], sizes = [8, 128], strides = [1, 1]} : vector<8x512xf32> to vector<8x128xf32>
      %262 = math.tanh %261 : vector<8x128xf32>
      %263 = vector.extract_strided_slice %248 {offsets = [0, 384], sizes = [8, 128], strides = [1, 1]} : vector<8x512xf32> to vector<8x128xf32>
      %264 = arith.negf %263 : vector<8x128xf32>
      %265 = math.exp %264 : vector<8x128xf32>
      %cst_66 = arith.constant 1.000000e+00 : f32
      %266 = vector.broadcast %cst_66 : f32 to vector<8x128xf32>
      %267 = arith.addf %266, %265 : vector<8x128xf32>
      %268 = arith.divf %266, %267 : vector<8x128xf32>
      %269 = arith.mulf %260, %238 : vector<8x128xf32>
      %270 = arith.mulf %254, %262 : vector<8x128xf32>
      %271 = arith.addf %269, %270 : vector<8x128xf32>
      %272 = math.tanh %271 : vector<8x128xf32>
      %273 = arith.mulf %268, %272 : vector<8x128xf32>
      %c5_i32 = arith.constant 5 : i32
      %274 = arith.addi %0, %c5_i32 : i32
      %275 = vector.broadcast %274 : i32 to vector<8x1xi32>
      %276 = arith.cmpi slt, %275, %23 : vector<8x1xi32>
      %277 = vector.shape_cast %276 : vector<8x1xi1> to vector<8x1xi1>
      %278 = vector.broadcast %277 : vector<8x1xi1> to vector<8x128xi1>
      %279 = arith.select %278, %273, %235 : vector<8x128xi1>, vector<8x128xf32>
      %280 = vector.shape_cast %276 : vector<8x1xi1> to vector<8x1xi1>
      %281 = vector.broadcast %280 : vector<8x1xi1> to vector<8x128xi1>
      %282 = arith.select %281, %271, %238 : vector<8x128xi1>, vector<8x128xf32>
      %cst_67 = arith.constant 0.000000e+00 : f32
      %283 = vector.broadcast %cst_67 : f32 to vector<8x128xf32>
      %284 = vector.shape_cast %276 : vector<8x1xi1> to vector<8x1xi1>
      %285 = vector.broadcast %284 : vector<8x1xi1> to vector<8x128xi1>
      %286 = arith.select %285, %273, %283 : vector<8x128xi1>, vector<8x128xf32>
      %c5 = arith.constant 5 : index
      %c0_68 = arith.constant 0 : index
      %c0_69 = arith.constant 0 : index
      %287 = vector.load %arg7[%c5, %c0_68, %c0_69] : memref<8x8x128xf32, #tpu.memory_space<vmem>>, vector<1x8x128xf32>
      %288 = vector.shape_cast %287 : vector<1x8x128xf32> to vector<8x128xf32>
      %289 = vector.shape_cast %286 : vector<8x128xf32> to vector<1x8x128xf32>
      tpu.vector_store %arg7[%c5, %c0_68, %c0_69], %289 {strides = array<i32>} : memref<8x8x128xf32, #tpu.memory_space<vmem>>, vector<1x8x128xf32>,
      %290 = vector.extract_strided_slice %21 {offsets = [48, 0], sizes = [8, 512], strides = [1, 1]} : vector<64x512xf32> to vector<8x512xf32>
      %cst_70 = arith.constant dense<0.000000e+00> : vector<8x512xf32>
      %291 = tpu.matmul %279, %22, %cst_70 {dimension_numbers = #tpu.dot_dimension_numbers<[1], [0], [0], [1], [0, 0, 1, 1], [], []>} : vector<8x128xf32>, vector<128x512xf32>, vector<8x512xf32> -> vector<8x512xf32>
      %292 = arith.addf %290, %291 : vector<8x512xf32>
      %293 = vector.extract_strided_slice %292 {offsets = [0, 0], sizes = [8, 128], strides = [1, 1]} : vector<8x512xf32> to vector<8x128xf32>
      %294 = arith.negf %293 : vector<8x128xf32>
      %295 = math.exp %294 : vector<8x128xf32>
      %cst_71 = arith.constant 1.000000e+00 : f32
      %296 = vector.broadcast %cst_71 : f32 to vector<8x128xf32>
      %297 = arith.addf %296, %295 : vector<8x128xf32>
      %298 = arith.divf %296, %297 : vector<8x128xf32>
      %299 = vector.extract_strided_slice %292 {offsets = [0, 128], sizes = [8, 128], strides = [1, 1]} : vector<8x512xf32> to vector<8x128xf32>
      %300 = arith.negf %299 : vector<8x128xf32>
      %301 = math.exp %300 : vector<8x128xf32>
      %cst_72 = arith.constant 1.000000e+00 : f32
      %302 = vector.broadcast %cst_72 : f32 to vector<8x128xf32>
      %303 = arith.addf %302, %301 : vector<8x128xf32>
      %304 = arith.divf %302, %303 : vector<8x128xf32>
      %305 = vector.extract_strided_slice %292 {offsets = [0, 256], sizes = [8, 128], strides = [1, 1]} : vector<8x512xf32> to vector<8x128xf32>
      %306 = math.tanh %305 : vector<8x128xf32>
      %307 = vector.extract_strided_slice %292 {offsets = [0, 384], sizes = [8, 128], strides = [1, 1]} : vector<8x512xf32> to vector<8x128xf32>
      %308 = arith.negf %307 : vector<8x128xf32>
      %309 = math.exp %308 : vector<8x128xf32>
      %cst_73 = arith.constant 1.000000e+00 : f32
      %310 = vector.broadcast %cst_73 : f32 to vector<8x128xf32>
      %311 = arith.addf %310, %309 : vector<8x128xf32>
      %312 = arith.divf %310, %311 : vector<8x128xf32>
      %313 = arith.mulf %304, %282 : vector<8x128xf32>
      %314 = arith.mulf %298, %306 : vector<8x128xf32>
      %315 = arith.addf %313, %314 : vector<8x128xf32>
      %316 = math.tanh %315 : vector<8x128xf32>
      %317 = arith.mulf %312, %316 : vector<8x128xf32>
      %c6_i32 = arith.constant 6 : i32
      %318 = arith.addi %0, %c6_i32 : i32
      %319 = vector.broadcast %318 : i32 to vector<8x1xi32>
      %320 = arith.cmpi slt, %319, %23 : vector<8x1xi32>
      %321 = vector.shape_cast %320 : vector<8x1xi1> to vector<8x1xi1>
      %322 = vector.broadcast %321 : vector<8x1xi1> to vector<8x128xi1>
      %323 = arith.select %322, %317, %279 : vector<8x128xi1>, vector<8x128xf32>
      %324 = vector.shape_cast %320 : vector<8x1xi1> to vector<8x1xi1>
      %325 = vector.broadcast %324 : vector<8x1xi1> to vector<8x128xi1>
      %326 = arith.select %325, %315, %282 : vector<8x128xi1>, vector<8x128xf32>
      %cst_74 = arith.constant 0.000000e+00 : f32
      %327 = vector.broadcast %cst_74 : f32 to vector<8x128xf32>
      %328 = vector.shape_cast %320 : vector<8x1xi1> to vector<8x1xi1>
      %329 = vector.broadcast %328 : vector<8x1xi1> to vector<8x128xi1>
      %330 = arith.select %329, %317, %327 : vector<8x128xi1>, vector<8x128xf32>
      %c6 = arith.constant 6 : index
      %c0_75 = arith.constant 0 : index
      %c0_76 = arith.constant 0 : index
      %331 = vector.load %arg7[%c6, %c0_75, %c0_76] : memref<8x8x128xf32, #tpu.memory_space<vmem>>, vector<1x8x128xf32>
      %332 = vector.shape_cast %331 : vector<1x8x128xf32> to vector<8x128xf32>
      %333 = vector.shape_cast %330 : vector<8x128xf32> to vector<1x8x128xf32>
      tpu.vector_store %arg7[%c6, %c0_75, %c0_76], %333 {strides = array<i32>} : memref<8x8x128xf32, #tpu.memory_space<vmem>>, vector<1x8x128xf32>,
      %334 = vector.extract_strided_slice %21 {offsets = [56, 0], sizes = [8, 512], strides = [1, 1]} : vector<64x512xf32> to vector<8x512xf32>
      %cst_77 = arith.constant dense<0.000000e+00> : vector<8x512xf32>
      %335 = tpu.matmul %323, %22, %cst_77 {dimension_numbers = #tpu.dot_dimension_numbers<[1], [0], [0], [1], [0, 0, 1, 1], [], []>} : vector<8x128xf32>, vector<128x512xf32>, vector<8x512xf32> -> vector<8x512xf32>
      %336 = arith.addf %334, %335 : vector<8x512xf32>
      %337 = vector.extract_strided_slice %336 {offsets = [0, 0], sizes = [8, 128], strides = [1, 1]} : vector<8x512xf32> to vector<8x128xf32>
      %338 = arith.negf %337 : vector<8x128xf32>
      %339 = math.exp %338 : vector<8x128xf32>
      %cst_78 = arith.constant 1.000000e+00 : f32
      %340 = vector.broadcast %cst_78 : f32 to vector<8x128xf32>
      %341 = arith.addf %340, %339 : vector<8x128xf32>
      %342 = arith.divf %340, %341 : vector<8x128xf32>
      %343 = vector.extract_strided_slice %336 {offsets = [0, 128], sizes = [8, 128], strides = [1, 1]} : vector<8x512xf32> to vector<8x128xf32>
      %344 = arith.negf %343 : vector<8x128xf32>
      %345 = math.exp %344 : vector<8x128xf32>
      %cst_79 = arith.constant 1.000000e+00 : f32
      %346 = vector.broadcast %cst_79 : f32 to vector<8x128xf32>
      %347 = arith.addf %346, %345 : vector<8x128xf32>
      %348 = arith.divf %346, %347 : vector<8x128xf32>
      %349 = vector.extract_strided_slice %336 {offsets = [0, 256], sizes = [8, 128], strides = [1, 1]} : vector<8x512xf32> to vector<8x128xf32>
      %350 = math.tanh %349 : vector<8x128xf32>
      %351 = vector.extract_strided_slice %336 {offsets = [0, 384], sizes = [8, 128], strides = [1, 1]} : vector<8x512xf32> to vector<8x128xf32>
      %352 = arith.negf %351 : vector<8x128xf32>
      %353 = math.exp %352 : vector<8x128xf32>
      %cst_80 = arith.constant 1.000000e+00 : f32
      %354 = vector.broadcast %cst_80 : f32 to vector<8x128xf32>
      %355 = arith.addf %354, %353 : vector<8x128xf32>
      %356 = arith.divf %354, %355 : vector<8x128xf32>
      %357 = arith.mulf %348, %326 : vector<8x128xf32>
      %358 = arith.mulf %342, %350 : vector<8x128xf32>
      %359 = arith.addf %357, %358 : vector<8x128xf32>
      %360 = math.tanh %359 : vector<8x128xf32>
      %361 = arith.mulf %356, %360 : vector<8x128xf32>
      %c7_i32 = arith.constant 7 : i32
      %362 = arith.addi %0, %c7_i32 : i32
      %363 = vector.broadcast %362 : i32 to vector<8x1xi32>
      %364 = arith.cmpi slt, %363, %23 : vector<8x1xi32>
      %365 = vector.shape_cast %364 : vector<8x1xi1> to vector<8x1xi1>
      %366 = vector.broadcast %365 : vector<8x1xi1> to vector<8x128xi1>
      %367 = arith.select %366, %361, %323 : vector<8x128xi1>, vector<8x128xf32>
      %368 = vector.shape_cast %364 : vector<8x1xi1> to vector<8x1xi1>
      %369 = vector.broadcast %368 : vector<8x1xi1> to vector<8x128xi1>
      %370 = arith.select %369, %359, %326 : vector<8x128xi1>, vector<8x128xf32>
      %cst_81 = arith.constant 0.000000e+00 : f32
      %371 = vector.broadcast %cst_81 : f32 to vector<8x128xf32>
      %372 = vector.shape_cast %364 : vector<8x1xi1> to vector<8x1xi1>
      %373 = vector.broadcast %372 : vector<8x1xi1> to vector<8x128xi1>
      %374 = arith.select %373, %361, %371 : vector<8x128xi1>, vector<8x128xf32>
      %c7 = arith.constant 7 : index
      %c0_82 = arith.constant 0 : index
      %c0_83 = arith.constant 0 : index
      %375 = vector.load %arg7[%c7, %c0_82, %c0_83] : memref<8x8x128xf32, #tpu.memory_space<vmem>>, vector<1x8x128xf32>
      %376 = vector.shape_cast %375 : vector<1x8x128xf32> to vector<8x128xf32>
      %377 = vector.shape_cast %374 : vector<8x128xf32> to vector<1x8x128xf32>
      tpu.vector_store %arg7[%c7, %c0_82, %c0_83], %377 {strides = array<i32>} : memref<8x8x128xf32, #tpu.memory_space<vmem>>, vector<1x8x128xf32>,
      %c0_84 = arith.constant 0 : index
      %c0_85 = arith.constant 0 : index
      %378 = vector.load %arg10[%c0_84, %c0_85] : memref<8x128xf32, #tpu.memory_space<vmem>>, vector<8x128xf32>
      tpu.vector_store %arg10[%c0_84, %c0_85], %367 {strides = array<i32>} : memref<8x128xf32, #tpu.memory_space<vmem>>, vector<8x128xf32>,
      %c0_86 = arith.constant 0 : index
      %c0_87 = arith.constant 0 : index
      %379 = vector.load %arg11[%c0_86, %c0_87] : memref<8x128xf32, #tpu.memory_space<vmem>>, vector<8x128xf32>
      tpu.vector_store %arg11[%c0_86, %c0_87], %370 {strides = array<i32>} : memref<8x128xf32, #tpu.memory_space<vmem>>, vector<8x128xf32>,
    } else {
    }
    %c0_3 = arith.constant 0 : index
    %c0_4 = arith.constant 0 : index
    %11 = vector.load %arg10[%c0_3, %c0_4] : memref<8x128xf32, #tpu.memory_space<vmem>>, vector<8x128xf32>
    %c0_5 = arith.constant 0 : index
    %c0_6 = arith.constant 0 : index
    %12 = vector.load %arg8[%c0_5, %c0_6] : memref<8x128xf32, #tpu.memory_space<vmem>>, vector<8x128xf32>
    tpu.vector_store %arg8[%c0_5, %c0_6], %11 {strides = array<i32>} : memref<8x128xf32, #tpu.memory_space<vmem>>, vector<8x128xf32>,
    %c0_7 = arith.constant 0 : index
    %c0_8 = arith.constant 0 : index
    %13 = vector.load %arg11[%c0_7, %c0_8] : memref<8x128xf32, #tpu.memory_space<vmem>>, vector<8x128xf32>
    %c0_9 = arith.constant 0 : index
    %c0_10 = arith.constant 0 : index
    %14 = vector.load %arg9[%c0_9, %c0_10] : memref<8x128xf32, #tpu.memory_space<vmem>>, vector<8x128xf32>
    tpu.vector_store %arg9[%c0_9, %c0_10], %13 {strides = array<i32>} : memref<8x128xf32, #tpu.memory_space<vmem>>, vector<8x128xf32>,
    return
  }
  func.func @transform_0(%arg0: i32, %arg1: memref<1xi32, #tpu.memory_space<smem>>) -> (i32, i32) {
    %c0_i32 = arith.constant 0 : i32
    %c0_i32_0 = arith.constant 0 : i32
    %c0_i32_1 = arith.constant 0 : i32
    return %c0_i32, %c0_i32_0 : i32, i32
  }
  func.func @transform_1(%arg0: i32, %arg1: memref<1xi32, #tpu.memory_space<smem>>) -> (i32, i32, i32) {
    %c0_i32 = arith.constant 0 : i32
    %c0_i32_0 = arith.constant 0 : i32
    %c0_i32_1 = arith.constant 0 : i32
    return %arg0, %c0_i32, %c0_i32_0 : i32, i32, i32
  }
  func.func @transform_2(%arg0: i32, %arg1: memref<1xi32, #tpu.memory_space<smem>>) -> (i32, i32) {
    %c0_i32 = arith.constant 0 : i32
    %c0_i32_0 = arith.constant 0 : i32
    %c0_i32_1 = arith.constant 0 : i32
    return %c0_i32, %c0_i32_0 : i32, i32
  }
  func.func @transform_3(%arg0: i32, %arg1: memref<1xi32, #tpu.memory_space<smem>>) -> (i32, i32) {
    %c0_i32 = arith.constant 0 : i32
    %c0_i32_0 = arith.constant 0 : i32
    %c0_i32_1 = arith.constant 0 : i32
    return %c0_i32, %c0_i32_0 : i32, i32
  }
  func.func @transform_4(%arg0: i32, %arg1: memref<1xi32, #tpu.memory_space<smem>>) -> (i32, i32) {
    %c0_i32 = arith.constant 0 : i32
    %c0_i32_0 = arith.constant 0 : i32
    %c0_i32_1 = arith.constant 0 : i32
    return %c0_i32, %c0_i32_0 : i32, i32
  }
  func.func @transform_5(%arg0: i32, %arg1: memref<1xi32, #tpu.memory_space<smem>>) -> (i32, i32, i32) {
    %c0_i32 = arith.constant 0 : i32
    %c0_i32_0 = arith.constant 0 : i32
    %c0_i32_1 = arith.constant 0 : i32
    return %arg0, %c0_i32, %c0_i32_0 : i32, i32, i32
  }
  func.func @transform_6(%arg0: i32, %arg1: memref<1xi32, #tpu.memory_space<smem>>) -> (i32, i32) {
    %c0_i32 = arith.constant 0 : i32
    %c0_i32_0 = arith.constant 0 : i32
    %c0_i32_1 = arith.constant 0 : i32
    return %c0_i32, %c0_i32_0 : i32, i32
  }
  func.func @transform_7(%arg0: i32, %arg1: memref<1xi32, #tpu.memory_space<smem>>) -> (i32, i32) {
    %c0_i32 = arith.constant 0 : i32
    %c0_i32_0 = arith.constant 0 : i32
    %c0_i32_1 = arith.constant 0 : i32
    return %c0_i32, %c0_i32_0 : i32, i32
  }
}

</mosaic_0001>

<llo_original>
// kernel: tpu_custom_call.1
$region0: #{tpu_custom_call.1}
  #allocation0 [shape = 'u32[]', space=smem, size = 0x4, offset = 0x4, fixed_abs, tag = 'smem constant byte address 0x4 - core index']
  #allocation1 [shape = 'u32[144,128]{1,0:T(1,128)}', space=vmem, size = 0x12000, scoped, tag = 'internal scratch']
  #allocation2 [shape = 'f32[8,128]{1,0:T(8,128)}', space=vmem, size = 0x1000, scoped, tag = 'scratch operand']
  #allocation3 [shape = 'f32[8,128]{1,0:T(8,128)}', space=vmem, size = 0x1000, scoped, tag = 'scratch operand']
  #allocation4 [shape = 's32[1]{0}', space=sflag, size = 0x4, scoped, tag = 'scoped memory for tpu_custom_call.1']
  #allocation5 [shape = 's32[1]{0:T(128)S(6)}', space=smem, size = 0x200, scoped, tag = 'prefetched SMEM operand 0']
  %s0 = inlined_call_operand.<no memory space> [shape: s32[1], index: 0, kind: input, shape index: {}]
  %s1 = inlined_call_operand.vmem [shape: s32[8,1], index: 1, kind: input, shape index: {}]
  %s2 = inlined_call_operand.hbm [shape: f32[8,8,128], index: 2, kind: input, shape index: {}]
  %s3 = inlined_call_operand.hbm [shape: f32[128,512], index: 3, kind: input, shape index: {}]
  %s4 = inlined_call_operand.hbm [shape: f32[128,512], index: 4, kind: input, shape index: {}]
  %s5 = inlined_call_operand.vmem [shape: f32[1,512], index: 5, kind: input, shape index: {}]
  %s6 = inlined_call_operand.hbm [shape: f32[8,8,128], index: 6, kind: output, shape index: {0}]
  %s7 = inlined_call_operand.hbm [shape: f32[8,128], index: 7, kind: output, shape index: {1}]
  %s8 = inlined_call_operand.hbm [shape: f32[8,128], index: 8, kind: output, shape index: {2}]
  %9 = xla_tuple %s6, %s7, %s8
  %s10 = sld [smem:[#allocation0]]
  $region70: #{tpu_custom_call.1} parent=0
    _
  %s12 = ssub.s32 1, %s10
  %s13 = scalar_select 0, %s12, %s10
  %14 = sst [smem:[#allocation5]] %s0
  $region1: #{tpu_custom_call.1} parent=0
    #allocation6 [shape = 'u8[32768]{0}', space=vmem, size = 0x8000, scoped, tag = 'input window, operand 2, single buffered']
    #allocation7 [shape = 's32[1]{0}', space=sflag, size = 0x4, scoped, tag = 'scoped memory for tpu_custom_call.1']
    #allocation8 [shape = 's32[1]{0}', space=sflag, size = 0x4, scoped, tag = 'scoped memory for tpu_custom_call.1']
    #allocation9 [shape = 'u8[262144]{0}', space=vmem, size = 0x40000, scoped, tag = 'input window, operand 3, single buffered']
    #allocation10 [shape = 's32[1]{0}', space=sflag, size = 0x4, scoped, tag = 'scoped memory for tpu_custom_call.1']
    #allocation11 [shape = 'u8[262144]{0}', space=vmem, size = 0x40000, scoped, tag = 'input window, operand 4, single buffered']
    #allocation12 [shape = 'u8[32768]{0}', space=vmem, size = 0x8000, scoped, tag = 'output window, operand 0, single buffered']
    #allocation13 [shape = 'u8[4096]{0}', space=vmem, size = 0x1000, scoped, tag = 'output window, operand 1, single buffered']
    #allocation14 [shape = 's32[1]{0}', space=sflag, size = 0x4, scoped, tag = 'scoped memory for tpu_custom_call.1']
    #allocation15 [shape = 'u8[4096]{0}', space=vmem, size = 0x1000, scoped, tag = 'output window, operand 2, single buffered']
    %15 = vsyncpa [#allocation7], 0
    %16 = vsyncpa [#allocation10], 0
    %17 = vsyncpa [#allocation8], 0
    %18 = vsyncpa [#allocation14], 0
    // Predicated region
    $region2: #{tpu_custom_call.1} parent=1 // pred_check
      _
    $region3: #{tpu_custom_call.1} parent=1 // pred_check_branch
      %20 = sbr.rel (0) target = $region5
    $region4: #{tpu_custom_call.1} parent=1 // pred_region
      _
    $region5: #{tpu_custom_call.1} parent=1 // pred_fallthru
      _
    // Predicated region
    $region6: #{tpu_custom_call.1} parent=1 // pred_check
      _
    $region7: #{tpu_custom_call.1} parent=1 // pred_check_branch
      %22 = sbr.rel (0) target = $region9
    $region8: #{tpu_custom_call.1} parent=1 // pred_region
      %s24 = ssub.s32 1024, 1024
      %25 = vsyncadd [#allocation7], %s24
      %s26 = sshll.u32 [#allocation6], 4
      %s27 = int_to_ptr.vmem [resolvable:$true] %s26
      %32 = dma.hbm_to_vmem [thread:$0]  %s2, 1024, %s27, [#allocation7], 128, 128, 8
    $region9: #{tpu_custom_call.1} parent=1 // pred_fallthru
      _
    // Predicated region
    $region10: #{tpu_custom_call.1} parent=1 // pred_check
      _
    $region11: #{tpu_custom_call.1} parent=1 // pred_check_branch
      %34 = sbr.rel (0) target = $region13
    $region12: #{tpu_custom_call.1} parent=1 // pred_region
      %s36 = ssub.s32 8192, 8192
      %37 = vsyncadd [#allocation10], %s36
      %s38 = sshll.u32 [#allocation9], 4
      %s39 = int_to_ptr.vmem [resolvable:$true] %s38
      %44 = dma.hbm_to_vmem [thread:$0]  %s3, 8192, %s39, [#allocation10], 512, 512, 32
    $region13: #{tpu_custom_call.1} parent=1 // pred_fallthru
      _
    // Predicated region
    $region14: #{tpu_custom_call.1} parent=1 // pred_check
      _
    $region15: #{tpu_custom_call.1} parent=1 // pred_check_branch
      %46 = sbr.rel (0) target = $region17
    $region16: #{tpu_custom_call.1} parent=1 // pred_region
      %s48 = ssub.s32 8192, 8192
      %49 = vsyncadd [#allocation10], %s48
      %s50 = sshll.u32 [#allocation11], 4
      %s51 = int_to_ptr.vmem [resolvable:$true] %s50
      %56 = dma.hbm_to_vmem [thread:$0]  %s4, 8192, %s51, [#allocation10], 512, 512, 32
    $region17: #{tpu_custom_call.1} parent=1 // pred_fallthru
      _
    // Predicated region
    $region18: #{tpu_custom_call.1} parent=1 // pred_check
      _
    $region19: #{tpu_custom_call.1} parent=1 // pred_check_branch
      %58 = sbr.rel (0) target = $region21
    $region20: #{tpu_custom_call.1} parent=1 // pred_region
      _
    $region21: #{tpu_custom_call.1} parent=1 // pred_fallthru
      _
    // Predicated region
    $region22: #{tpu_custom_call.1} parent=1 // pred_check
      _
    $region23: #{tpu_custom_call.1} parent=1 // pred_check_branch
      %60 = sbr.rel (0) target = $region25
    $region24: #{tpu_custom_call.1} parent=1 // pred_region
      %61 = dma.done [#allocation7], 1024
    $region25: #{tpu_custom_call.1} parent=1 // pred_fallthru
      _
    // Predicated region
    $region26: #{tpu_custom_call.1} parent=1 // pred_check
      _
    $region27: #{tpu_custom_call.1} parent=1 // pred_check_branch
      %63 = sbr.rel (0) target = $region29
    $region28: #{tpu_custom_call.1} parent=1 // pred_region
      %64 = dma.done [#allocation10], 8192
    $region29: #{tpu_custom_call.1} parent=1 // pred_fallthru
      _
    // Predicated region
    $region30: #{tpu_custom_call.1} parent=1 // pred_check
      _
    $region31: #{tpu_custom_call.1} parent=1 // pred_check_branch
      %66 = sbr.rel (0) target = $region33
    $region32: #{tpu_custom_call.1} parent=1 // pred_region
      %67 = dma.done [#allocation10], 8192
    $region33: #{tpu_custom_call.1} parent=1 // pred_fallthru
      _
    %s68 = smul.u32 0, 8
    %s69 = sld [smem:[#allocation5]]
    %p70 = scmp.eq.s32.totalorder 0, 0
    // Predicated region
    $region34: #{tpu_custom_call.1} parent=1 // pred_check
      %p71 = pneg %p70
    $region35: #{tpu_custom_call.1} parent=1 // pred_check_branch
      %73 = sbr.rel (%p71) target = $region37
    $region36: #{tpu_custom_call.1} parent=1 // pred_region
      %74 = vst [vmem:[#allocation2] sm:$0xff] 0.0
      %75 = vst [vmem:[#allocation3] sm:$0xff] 0.0
    $region37: #{tpu_custom_call.1} parent=1 // pred_fallthru
      _
    %p76 = scmp.ge.s32.totalorder %s68, %s69
    // Predicated region
    $region38: #{tpu_custom_call.1} parent=1 // pred_check
      %p77 = pneg %p76
    $region39: #{tpu_custom_call.1} parent=1 // pred_check_branch
      %79 = sbr.rel (%p77) target = $region41
    $region40: #{tpu_custom_call.1} parent=1 // pred_region
      %80 = vst [vmem:[#allocation12] sm:$0xff] 0.0
      %81 = vst [vmem:[#allocation12 + $0x8] sm:$0xff] 0.0
      %82 = vst [vmem:[#allocation12 + $0x10] sm:$0xff] 0.0
      %83 = vst [vmem:[#allocation12 + $0x18] sm:$0xff] 0.0
      %84 = vst [vmem:[#allocation12 + $0x20] sm:$0xff] 0.0
      %85 = vst [vmem:[#allocation12 + $0x28] sm:$0xff] 0.0
      %86 = vst [vmem:[#allocation12 + $0x30] sm:$0xff] 0.0
      %87 = vst [vmem:[#allocation12 + $0x38] sm:$0xff] 0.0
    $region41: #{tpu_custom_call.1} parent=1 // pred_fallthru
      _
    %p88 = scmp.lt.s32.totalorder %s68, %s69
    // Predicated region
    $region42: #{tpu_custom_call.1} parent=1 // pred_check
      %p89 = pneg %p88
    $region43: #{tpu_custom_call.1} parent=1 // pred_check_branch
      %91 = sbr.rel (%p89) target = $region45
    $region44: #{tpu_custom_call.1} parent=1 // pred_region
      %v92 = vld [vmem:[#allocation6] sm:$0xff]
      %v93 = vld [vmem:[#allocation6 + $0x8] sm:$0xff]
      %v94 = vld [vmem:[#allocation6 + $0x10] sm:$0xff]
      %v95 = vld [vmem:[#allocation6 + $0x18] sm:$0xff]
      %v96 = vld [vmem:[#allocation6 + $0x20] sm:$0xff]
      %v97 = vld [vmem:[#allocation6 + $0x28] sm:$0xff]
      %v98 = vld [vmem:[#allocation6 + $0x30] sm:$0xff]
      %v99 = vld [vmem:[#allocation6 + $0x38] sm:$0xff]
      %v100 = vld [vmem:[#allocation9] sm:$0xff]
      %v101 = vld [vmem:[#allocation9 + $0x8] sm:$0xff]
      %v102 = vld [vmem:[#allocation9 + $0x10] sm:$0xff]
      %v103 = vld [vmem:[#allocation9 + $0x18] sm:$0xff]
      %v104 = vld [vmem:[#allocation9 + $0x20] sm:$0xff]
      %v105 = vld [vmem:[#allocation9 + $0x28] sm:$0xff]
      %v106 = vld [vmem:[#allocation9 + $0x30] sm:$0xff]
      %v107 = vld [vmem:[#allocation9 + $0x38] sm:$0xff]
      %v108 = vld [vmem:[#allocation9 + $0x40] sm:$0xff]
      %v109 = vld [vmem:[#allocation9 + $0x48] sm:$0xff]
      %v110 = vld [vmem:[#allocation9 + $0x50] sm:$0xff]
      %v111 = vld [vmem:[#allocation9 + $0x58] sm:$0xff]
      %v112 = vld [vmem:[#allocation9 + $0x60] sm:$0xff]
      %v113 = vld [vmem:[#allocation9 + $0x68] sm:$0xff]
      %v114 = vld [vmem:[#allocation9 + $0x70] sm:$0xff]
      %v115 = vld [vmem:[#allocation9 + $0x78] sm:$0xff]
      %v116 = vld [vmem:[#allocation9 + $0x80] sm:$0xff]
      %v117 = vld [vmem:[#allocation9 + $0x88] sm:$0xff]
      %v118 = vld [vmem:[#allocation9 + $0x90] sm:$0xff]
      %v119 = vld [vmem:[#allocation9 + $0x98] sm:$0xff]
      %v120 = vld [vmem:[#allocation9 + $0xa0] sm:$0xff]
      %v121 = vld [vmem:[#allocation9 + $0xa8] sm:$0xff]
      %v122 = vld [vmem:[#allocation9 + $0xb0] sm:$0xff]
      %v123 = vld [vmem:[#allocation9 + $0xb8] sm:$0xff]
      %v124 = vld [vmem:[#allocation9 + $0xc0] sm:$0xff]
      %v125 = vld [vmem:[#allocation9 + $0xc8] sm:$0xff]
      %v126 = vld [vmem:[#allocation9 + $0xd0] sm:$0xff]
      %v127 = vld [vmem:[#allocation9 + $0xd8] sm:$0xff]
      %v128 = vld [vmem:[#allocation9 + $0xe0] sm:$0xff]
      %v129 = vld [vmem:[#allocation9 + $0xe8] sm:$0xff]
      %v130 = vld [vmem:[#allocation9 + $0xf0] sm:$0xff]
      %v131 = vld [vmem:[#allocation9 + $0xf8] sm:$0xff]
      %v132 = vld [vmem:[#allocation9 + $0x100] sm:$0xff]
      %v133 = vld [vmem:[#allocation9 + $0x108] sm:$0xff]
      %v134 = vld [vmem:[#allocation9 + $0x110] sm:$0xff]
      %v135 = vld [vmem:[#allocation9 + $0x118] sm:$0xff]
      %v136 = vld [vmem:[#allocation9 + $0x120] sm:$0xff]
      %v137 = vld [vmem:[#allocation9 + $0x128] sm:$0xff]
      %v138 = vld [vmem:[#allocation9 + $0x130] sm:$0xff]
      %v139 = vld [vmem:[#allocation9 + $0x138] sm:$0xff]
      %v140 = vld [vmem:[#allocation9 + $0x140] sm:$0xff]
      %v141 = vld [vmem:[#allocation9 + $0x148] sm:$0xff]
      %v142 = vld [vmem:[#allocation9 + $0x150] sm:$0xff]
      %v143 = vld [vmem:[#allocation9 + $0x158] sm:$0xff]
      %v144 = vld [vmem:[#allocation9 + $0x160] sm:$0xff]
      %v145 = vld [vmem:[#allocation9 + $0x168] sm:$0xff]
      %v146 = vld [vmem:[#allocation9 + $0x170] sm:$0xff]
      %v147 = vld [vmem:[#allocation9 + $0x178] sm:$0xff]
      %v148 = vld [vmem:[#allocation9 + $0x180] sm:$0xff]
      %v149 = vld [vmem:[#allocation9 + $0x188] sm:$0xff]
      %v150 = vld [vmem:[#allocation9 + $0x190] sm:$0xff]
      %v151 = vld [vmem:[#allocation9 + $0x198] sm:$0xff]
      %v152 = vld [vmem:[#allocation9 + $0x1a0] sm:$0xff]
      %v153 = vld [vmem:[#allocation9 + $0x1a8] sm:$0xff]
      %v154 = vld [vmem:[#allocation9 + $0x1b0] sm:$0xff]
      %v155 = vld [vmem:[#allocation9 + $0x1b8] sm:$0xff]
      %v156 = vld [vmem:[#allocation9 + $0x1c0] sm:$0xff]
      %v157 = vld [vmem:[#allocation9 + $0x1c8] sm:$0xff]
      %v158 = vld [vmem:[#allocation9 + $0x1d0] sm:$0xff]
      %v159 = vld [vmem:[#allocation9 + $0x1d8] sm:$0xff]
      %v160 = vld [vmem:[#allocation9 + $0x1e0] sm:$0xff]
      %v161 = vld [vmem:[#allocation9 + $0x1e8] sm:$0xff]
      %v162 = vld [vmem:[#allocation9 + $0x1f0] sm:$0xff]
      %v163 = vld [vmem:[#allocation9 + $0x1f8] sm:$0xff]
      %v164 = vld [vmem:[%s5] sm:$0xf]
      %v166 = vlaneseq
      %v167 = vshrl.u32 %v166, 7
      %v168 = vsub.s32 0, %v167
      %v169 = vrot.slane %v164, %v168
      %v170 = vlaneseq
      %v171 = vshrl.u32 %v170, 7
      %v172 = vsub.s32 1, %v171
      %v173 = vrot.slane %v164, %v172
      %v174 = vlaneseq
      %v175 = vshrl.u32 %v174, 7
      %v176 = vsub.s32 2, %v175
      %v177 = vrot.slane %v164, %v176
      %v178 = vlaneseq
      %v179 = vshrl.u32 %v178, 7
      %v180 = vsub.s32 3, %v179
      %v181 = vrot.slane %v164, %v180
      %186 = vmatprep.subr.mxu0 %v161
      %187 = vmatpush1.msra.mxu0 %v160
      %188 = vmatprep.subr.mxu0 %v157
      %189 = vmatpush1.msra.mxu0 %v156
      %190 = vmatprep.subr.mxu0 %v153
      %191 = vmatpush1.msra.mxu0 %v152
      %192 = vmatprep.subr.mxu0 %v149
      %193 = vmatpush1.msra.mxu0 %v148
      %194 = vmatprep.subr.mxu0 %v145
      %195 = vmatpush1.msra.mxu0 %v144
      %196 = vmatprep.subr.mxu0 %v141
      %197 = vmatpush1.msra.mxu0 %v140
      %198 = vmatprep.subr.mxu0 %v137
      %199 = vmatpush1.msra.mxu0 %v136
      %200 = vmatprep.subr.mxu0 %v133
      %201 = vmatpush1.msra.mxu0 %v132
      %202 = vmatprep.subr.mxu0 %v129
      %203 = vmatpush1.msra.mxu0 %v128
      %204 = vmatprep.subr.mxu0 %v125
      %205 = vmatpush1.msra.mxu0 %v124
      %206 = vmatprep.subr.mxu0 %v121
      %207 = vmatpush1.msra.mxu0 %v120
      %208 = vmatprep.subr.mxu0 %v117
      %209 = vmatpush1.msra.mxu0 %v116
      %210 = vmatprep.subr.mxu0 %v113
      %211 = vmatpush1.msra.mxu0 %v112
      %212 = vmatprep.subr.mxu0 %v109
      %213 = vmatpush1.msra.mxu0 %v108
      %214 = vmatprep.subr.mxu0 %v105
      %215 = vmatpush1.msra.mxu0 %v104
      %216 = vmatprep.subr.mxu0 %v101
      %217 = vmatpush1.msra.mxu0 %v100
      %218 = vmatprep.subr.mxu0 0.0
      %219 = vmatpush2.msra.mxu0 0.0
      %220 = vmatprep.subr.mxu0 0.0
      %221 = vmatpush2.msra.mxu0 0.0
      %222 = vmatprep.subr.mxu0 0.0
      %223 = vmatpush2.msra.mxu0 0.0
      %224 = vmatprep.subr.mxu0 0.0
      %225 = vmatpush2.msra.mxu0 0.0
      %226 = vmatprep.subr.mxu0 0.0
      %227 = vmatpush2.msra.mxu0 0.0
      %228 = vmatprep.subr.mxu0 0.0
      %229 = vmatpush2.msra.mxu0 0.0
      %230 = vmatprep.subr.mxu0 0.0
      %231 = vmatpush2.msra.mxu0 0.0
      %232 = vmatprep.subr.mxu0 0.0
      %233 = vmatpush2.msra.mxu0 0.0
      %234 = vmatprep.subr.mxu0 0.0
      %235 = vmatpush2.msra.mxu0 0.0
      %236 = vmatprep.subr.mxu0 0.0
      %237 = vmatpush2.msra.mxu0 0.0
      %238 = vmatprep.subr.mxu0 0.0
      %239 = vmatpush2.msra.mxu0 0.0
      %240 = vmatprep.subr.mxu0 0.0
      %241 = vmatpush2.msra.mxu0 0.0
      %242 = vmatprep.subr.mxu0 0.0
      %243 = vmatpush2.msra.mxu0 0.0
      %244 = vmatprep.subr.mxu0 0.0
      %245 = vmatpush2.msra.mxu0 0.0
      %246 = vmatprep.subr.mxu0 0.0
      %247 = vmatpush2.msra.mxu0 0.0
      %248 = vmatprep.subr.mxu0 0.0
      %249 = vmatpush2.msra.mxu0 0.0
      %250 = vmatprep.mubr.f32.mxu0 0.0
      %251 = vmatmul.mubr.f32.gmra.mxu0 %v92
      %v252 = vpop.f32.mrf.mxu0
      %v253 = vadd.f32 %v169, %v252
      %v254 = vpop.f32.mrf.mxu0
      %v255 = vadd.f32 %v173, %v254
      %256 = vmatprep.mubr.f32.mxu0 0.0
      %257 = vmatmul.mubr.f32.gmra.mxu0 %v93
      %v258 = vpop.f32.mrf.mxu0
      %v259 = vadd.f32 %v169, %v258
      %v260 = vpop.f32.mrf.mxu0
      %v261 = vadd.f32 %v173, %v260
      %262 = vmatprep.mubr.f32.mxu0 0.0
      %263 = vmatmul.mubr.f32.gmra.mxu0 %v94
      %v264 = vpop.f32.mrf.mxu0
      %v265 = vadd.f32 %v169, %v264
      %v266 = vpop.f32.mrf.mxu0
      %v267 = vadd.f32 %v173, %v266
      %268 = vmatprep.mubr.f32.mxu0 0.0
      %269 = vmatmul.mubr.f32.gmra.mxu0 %v95
      %v270 = vpop.f32.mrf.mxu0
      %v271 = vadd.f32 %v169, %v270
      %v272 = vpop.f32.mrf.mxu0
      %v273 = vadd.f32 %v173, %v272
      %274 = vmatprep.mubr.f32.mxu0 0.0
      %275 = vmatmul.mubr.f32.gmra.mxu0 %v96
      %v276 = vpop.f32.mrf.mxu0
      %v277 = vadd.f32 %v169, %v276
      %v278 = vpop.f32.mrf.mxu0
      %v279 = vadd.f32 %v173, %v278
      %280 = vmatprep.mubr.f32.mxu0 0.0
      %281 = vmatmul.mubr.f32.gmra.mxu0 %v97
      %v282 = vpop.f32.mrf.mxu0
      %v283 = vadd.f32 %v169, %v282
      %v284 = vpop.f32.mrf.mxu0
      %v285 = vadd.f32 %v173, %v284
      %286 = vmatprep.mubr.f32.mxu0 0.0
      %287 = vmatmul.mubr.f32.gmra.mxu0 %v98
      %v288 = vpop.f32.mrf.mxu0
      %v289 = vadd.f32 %v169, %v288
      %v290 = vpop.f32.mrf.mxu0
      %v291 = vadd.f32 %v173, %v290
      %292 = vmatprep.mubr.f32.mxu0 0.0
      %293 = vmatmul.mubr.f32.gmra.mxu0 %v99
      %v294 = vpop.f32.mrf.mxu0
      %v295 = vadd.f32 %v169, %v294
      %v296 = vpop.f32.mrf.mxu0
      %v297 = vadd.f32 %v173, %v296
      %298 = vdwg.mxu0
      %299 = vmatprep.subr.mxu0 %v163
      %300 = vmatpush1.msra.mxu0 %v162
      %301 = vmatprep.subr.mxu0 %v159
      %302 = vmatpush1.msra.mxu0 %v158
      %303 = vmatprep.subr.mxu0 %v155
      %304 = vmatpush1.msra.mxu0 %v154
      %305 = vmatprep.subr.mxu0 %v151
      %306 = vmatpush1.msra.mxu0 %v150
      %307 = vmatprep.subr.mxu0 %v147
      %308 = vmatpush1.msra.mxu0 %v146
      %309 = vmatprep.subr.mxu0 %v143
      %310 = vmatpush1.msra.mxu0 %v142
      %311 = vmatprep.subr.mxu0 %v139
      %312 = vmatpush1.msra.mxu0 %v138
      %313 = vmatprep.subr.mxu0 %v135
      %314 = vmatpush1.msra.mxu0 %v134
      %315 = vmatprep.subr.mxu0 %v131
      %316 = vmatpush1.msra.mxu0 %v130
      %317 = vmatprep.subr.mxu0 %v127
      %318 = vmatpush1.msra.mxu0 %v126
      %319 = vmatprep.subr.mxu0 %v123
      %320 = vmatpush1.msra.mxu0 %v122
      %321 = vmatprep.subr.mxu0 %v119
      %322 = vmatpush1.msra.mxu0 %v118
      %323 = vmatprep.subr.mxu0 %v115
      %324 = vmatpush1.msra.mxu0 %v114
      %325 = vmatprep.subr.mxu0 %v111
      %326 = vmatpush1.msra.mxu0 %v110
      %327 = vmatprep.subr.mxu0 %v107
      %328 = vmatpush1.msra.mxu0 %v106
      %329 = vmatprep.subr.mxu0 %v103
      %330 = vmatpush1.msra.mxu0 %v102
      %331 = vmatprep.subr.mxu0 0.0
      %332 = vmatpush2.msra.mxu0 0.0
      %333 = vmatprep.subr.mxu0 0.0
      %334 = vmatpush2.msra.mxu0 0.0
      %335 = vmatprep.subr.mxu0 0.0
      %336 = vmatpush2.msra.mxu0 0.0
      %337 = vmatprep.subr.mxu0 0.0
      %338 = vmatpush2.msra.mxu0 0.0
      %339 = vmatprep.subr.mxu0 0.0
      %340 = vmatpush2.msra.mxu0 0.0
      %341 = vmatprep.subr.mxu0 0.0
      %342 = vmatpush2.msra.mxu0 0.0
      %343 = vmatprep.subr.mxu0 0.0
      %344 = vmatpush2.msra.mxu0 0.0
      %345 = vmatprep.subr.mxu0 0.0
      %346 = vmatpush2.msra.mxu0 0.0
      %347 = vmatprep.subr.mxu0 0.0
      %348 = vmatpush2.msra.mxu0 0.0
      %349 = vmatprep.subr.mxu0 0.0
      %350 = vmatpush2.msra.mxu0 0.0
      %351 = vmatprep.subr.mxu0 0.0
      %352 = vmatpush2.msra.mxu0 0.0
      %353 = vmatprep.subr.mxu0 0.0
      %354 = vmatpush2.msra.mxu0 0.0
      %355 = vmatprep.subr.mxu0 0.0
      %356 = vmatpush2.msra.mxu0 0.0
      %357 = vmatprep.subr.mxu0 0.0
      %358 = vmatpush2.msra.mxu0 0.0
      %359 = vmatprep.subr.mxu0 0.0
      %360 = vmatpush2.msra.mxu0 0.0
      %361 = vmatprep.subr.mxu0 0.0
      %362 = vmatpush2.msra.mxu0 0.0
      %363 = vmatprep.mubr.f32.mxu0 0.0
      %364 = vmatmul.mubr.f32.gmra.mxu0 %v92
      %v365 = vpop.f32.mrf.mxu0
      %v366 = vadd.f32 %v177, %v365
      %v367 = vpop.f32.mrf.mxu0
      %v368 = vadd.f32 %v181, %v367
      %369 = vmatprep.mubr.f32.mxu0 0.0
      %370 = vmatmul.mubr.f32.gmra.mxu0 %v93
      %v371 = vpop.f32.mrf.mxu0
      %v372 = vadd.f32 %v177, %v371
      %v373 = vpop.f32.mrf.mxu0
      %v374 = vadd.f32 %v181, %v373
      %375 = vmatprep.mubr.f32.mxu0 0.0
      %376 = vmatmul.mubr.f32.gmra.mxu0 %v94
      %v377 = vpop.f32.mrf.mxu0
      %v378 = vadd.f32 %v177, %v377
      %v379 = vpop.f32.mrf.mxu0
      %v380 = vadd.f32 %v181, %v379
      %381 = vmatprep.mubr.f32.mxu0 0.0
      %382 = vmatmul.mubr.f32.gmra.mxu0 %v95
      %v383 = vpop.f32.mrf.mxu0
      %v384 = vadd.f32 %v177, %v383
      %v385 = vpop.f32.mrf.mxu0
      %v386 = vadd.f32 %v181, %v385
      %387 = vmatprep.mubr.f32.mxu0 0.0
      %388 = vmatmul.mubr.f32.gmra.mxu0 %v96
      %v389 = vpop.f32.mrf.mxu0
      %v390 = vadd.f32 %v177, %v389
      %v391 = vpop.f32.mrf.mxu0
      %v392 = vadd.f32 %v181, %v391
      %393 = vmatprep.mubr.f32.mxu0 0.0
      %394 = vmatmul.mubr.f32.gmra.mxu0 %v97
      %v395 = vpop.f32.mrf.mxu0
      %v396 = vadd.f32 %v177, %v395
      %v397 = vpop.f32.mrf.mxu0
      %v398 = vadd.f32 %v181, %v397
      %399 = vmatprep.mubr.f32.mxu0 0.0
      %400 = vmatmul.mubr.f32.gmra.mxu0 %v98
      %v401 = vpop.f32.mrf.mxu0
      %v402 = vadd.f32 %v177, %v401
      %v403 = vpop.f32.mrf.mxu0
      %v404 = vadd.f32 %v181, %v403
      %405 = vmatprep.mubr.f32.mxu0 0.0
      %406 = vmatmul.mubr.f32.gmra.mxu0 %v99
      %v407 = vpop.f32.mrf.mxu0
      %v408 = vadd.f32 %v177, %v407
      %v409 = vpop.f32.mrf.mxu0
      %v410 = vadd.f32 %v181, %v409
      %411 = vdwg.mxu0
      %v412 = vld [vmem:[#allocation11] sm:$0xff]
      %v413 = vld [vmem:[#allocation11 + $0x8] sm:$0xff]
      %v414 = vld [vmem:[#allocation11 + $0x10] sm:$0xff]
      %v415 = vld [vmem:[#allocation11 + $0x18] sm:$0xff]
      %v416 = vld [vmem:[#allocation11 + $0x20] sm:$0xff]
      %v417 = vld [vmem:[#allocation11 + $0x28] sm:$0xff]
      %v418 = vld [vmem:[#allocation11 + $0x30] sm:$0xff]
      %v419 = vld [vmem:[#allocation11 + $0x38] sm:$0xff]
      %v420 = vld [vmem:[#allocation11 + $0x40] sm:$0xff]
      %v421 = vld [vmem:[#allocation11 + $0x48] sm:$0xff]
      %v422 = vld [vmem:[#allocation11 + $0x50] sm:$0xff]
      %v423 = vld [vmem:[#allocation11 + $0x58] sm:$0xff]
      %v424 = vld [vmem:[#allocation11 + $0x60] sm:$0xff]
      %v425 = vld [vmem:[#allocation11 + $0x68] sm:$0xff]
      %v426 = vld [vmem:[#allocation11 + $0x70] sm:$0xff]
      %v427 = vld [vmem:[#allocation11 + $0x78] sm:$0xff]
      %v428 = vld [vmem:[#allocation11 + $0x80] sm:$0xff]
      %v429 = vld [vmem:[#allocation11 + $0x88] sm:$0xff]
      %v430 = vld [vmem:[#allocation11 + $0x90] sm:$0xff]
      %v431 = vld [vmem:[#allocation11 + $0x98] sm:$0xff]
      %v432 = vld [vmem:[#allocation11 + $0xa0] sm:$0xff]
      %v433 = vld [vmem:[#allocation11 + $0xa8] sm:$0xff]
      %v434 = vld [vmem:[#allocation11 + $0xb0] sm:$0xff]
      %v435 = vld [vmem:[#allocation11 + $0xb8] sm:$0xff]
      %v436 = vld [vmem:[#allocation11 + $0xc0] sm:$0xff]
      %v437 = vld [vmem:[#allocation11 + $0xc8] sm:$0xff]
      %v438 = vld [vmem:[#allocation11 + $0xd0] sm:$0xff]
      %v439 = vld [vmem:[#allocation11 + $0xd8] sm:$0xff]
      %v440 = vld [vmem:[#allocation11 + $0xe0] sm:$0xff]
      %v441 = vld [vmem:[#allocation11 + $0xe8] sm:$0xff]
      %v442 = vld [vmem:[#allocation11 + $0xf0] sm:$0xff]
      %v443 = vld [vmem:[#allocation11 + $0xf8] sm:$0xff]
      %v444 = vld [vmem:[#allocation11 + $0x100] sm:$0xff]
      %v445 = vld [vmem:[#allocation11 + $0x108] sm:$0xff]
      %v446 = vld [vmem:[#allocation11 + $0x110] sm:$0xff]
      %v447 = vld [vmem:[#allocation11 + $0x118] sm:$0xff]
      %v448 = vld [vmem:[#allocation11 + $0x120] sm:$0xff]
      %v449 = vld [vmem:[#allocation11 + $0x128] sm:$0xff]
      %v450 = vld [vmem:[#allocation11 + $0x130] sm:$0xff]
      %v451 = vld [vmem:[#allocation11 + $0x138] sm:$0xff]
      %v452 = vld [vmem:[#allocation11 + $0x140] sm:$0xff]
      %v453 = vld [vmem:[#allocation11 + $0x148] sm:$0xff]
      %v454 = vld [vmem:[#allocation11 + $0x150] sm:$0xff]
      %v455 = vld [vmem:[#allocation11 + $0x158] sm:$0xff]
      %v456 = vld [vmem:[#allocation11 + $0x160] sm:$0xff]
      %v457 = vld [vmem:[#allocation11 + $0x168] sm:$0xff]
      %v458 = vld [vmem:[#allocation11 + $0x170] sm:$0xff]
      %v459 = vld [vmem:[#allocation11 + $0x178] sm:$0xff]
      %v460 = vld [vmem:[#allocation11 + $0x180] sm:$0xff]
      %v461 = vld [vmem:[#allocation11 + $0x188] sm:$0xff]
      %v462 = vld [vmem:[#allocation11 + $0x190] sm:$0xff]
      %v463 = vld [vmem:[#allocation11 + $0x198] sm:$0xff]
      %v464 = vld [vmem:[#allocation11 + $0x1a0] sm:$0xff]
      %v465 = vld [vmem:[#allocation11 + $0x1a8] sm:$0xff]
      %v466 = vld [vmem:[#allocation11 + $0x1b0] sm:$0xff]
      %v467 = vld [vmem:[#allocation11 + $0x1b8] sm:$0xff]
      %v468 = vld [vmem:[#allocation11 + $0x1c0] sm:$0xff]
      %v469 = vld [vmem:[#allocation11 + $0x1c8] sm:$0xff]
      %v470 = vld [vmem:[#allocation11 + $0x1d0] sm:$0xff]
      %v471 = vld [vmem:[#allocation11 + $0x1d8] sm:$0xff]
      %v472 = vld [vmem:[#allocation11 + $0x1e0] sm:$0xff]
      %v473 = vld [vmem:[#allocation11 + $0x1e8] sm:$0xff]
      %v474 = vld [vmem:[#allocation11 + $0x1f0] sm:$0xff]
      %v475 = vld [vmem:[#allocation11 + $0x1f8] sm:$0xff]
      %v476 = vld [vmem:[%s1] sm:$0xff]
      %v477 = vld [vmem:[#allocation2] sm:$0xff]
      %v478 = vld [vmem:[#allocation3] sm:$0xff]
      %479 = vmatprep.subr.mxu0 %v473
      %480 = vmatpush1.msra.mxu0 %v472
      %481 = vmatprep.subr.mxu0 %v469
      %482 = vmatpush1.msra.mxu0 %v468
      %483 = vmatprep.subr.mxu0 %v465
      %484 = vmatpush1.msra.mxu0 %v464
      %485 = vmatprep.subr.mxu0 %v461
      %486 = vmatpush1.msra.mxu0 %v460
      %487 = vmatprep.subr.mxu0 %v457
      %488 = vmatpush1.msra.mxu0 %v456
      %489 = vmatprep.subr.mxu0 %v453
      %490 = vmatpush1.msra.mxu0 %v452
      %491 = vmatprep.subr.mxu0 %v449
      %492 = vmatpush1.msra.mxu0 %v448
      %493 = vmatprep.subr.mxu0 %v445
      %494 = vmatpush1.msra.mxu0 %v444
      %495 = vmatprep.subr.mxu0 %v441
      %496 = vmatpush1.msra.mxu0 %v440
      %497 = vmatprep.subr.mxu0 %v437
      %498 = vmatpush1.msra.mxu0 %v436
      %499 = vmatprep.subr.mxu0 %v433
      %500 = vmatpush1.msra.mxu0 %v432
      %501 = vmatprep.subr.mxu0 %v429
      %502 = vmatpush1.msra.mxu0 %v428
      %503 = vmatprep.subr.mxu0 %v425
      %504 = vmatpush1.msra.mxu0 %v424
      %505 = vmatprep.subr.mxu0 %v421
      %506 = vmatpush1.msra.mxu0 %v420
      %507 = vmatprep.subr.mxu0 %v417
      %508 = vmatpush1.msra.mxu0 %v416
      %509 = vmatprep.subr.mxu0 %v413
      %510 = vmatpush1.msra.mxu0 %v412
      %511 = vmatprep.subr.mxu0 0.0
      %512 = vmatpush2.msra.mxu0 0.0
      %513 = vmatprep.subr.mxu0 0.0
      %514 = vmatpush2.msra.mxu0 0.0
      %515 = vmatprep.subr.mxu0 0.0
      %516 = vmatpush2.msra.mxu0 0.0
      %517 = vmatprep.subr.mxu0 0.0
      %518 = vmatpush2.msra.mxu0 0.0
      %519 = vmatprep.subr.mxu0 0.0
      %520 = vmatpush2.msra.mxu0 0.0
      %521 = vmatprep.subr.mxu0 0.0
      %522 = vmatpush2.msra.mxu0 0.0
      %523 = vmatprep.subr.mxu0 0.0
      %524 = vmatpush2.msra.mxu0 0.0
      %525 = vmatprep.subr.mxu0 0.0
      %526 = vmatpush2.msra.mxu0 0.0
      %527 = vmatprep.subr.mxu0 0.0
      %528 = vmatpush2.msra.mxu0 0.0
      %529 = vmatprep.subr.mxu0 0.0
      %530 = vmatpush2.msra.mxu0 0.0
      %531 = vmatprep.subr.mxu0 0.0
      %532 = vmatpush2.msra.mxu0 0.0
      %533 = vmatprep.subr.mxu0 0.0
      %534 = vmatpush2.msra.mxu0 0.0
      %535 = vmatprep.subr.mxu0 0.0
      %536 = vmatpush2.msra.mxu0 0.0
      %537 = vmatprep.subr.mxu0 0.0
      %538 = vmatpush2.msra.mxu0 0.0
      %539 = vmatprep.subr.mxu0 0.0
      %540 = vmatpush2.msra.mxu0 0.0
      %541 = vmatprep.subr.mxu0 0.0
      %542 = vmatpush2.msra.mxu0 0.0
      %543 = vmatprep.mubr.f32.mxu0 0.0
      %544 = vmatmul.mubr.f32.gmra.mxu0 %v477
      %v545 = vpop.f32.mrf.mxu0
      %v546 = vadd.f32 0.0, %v545
      %v547 = vpop.f32.mrf.mxu0
      %v548 = vadd.f32 0.0, %v547
      %549 = vdwg.mxu0
      %550 = vmatprep.subr.mxu0 %v475
      %551 = vmatpush1.msra.mxu0 %v474
      %552 = vmatprep.subr.mxu0 %v471
      %553 = vmatpush1.msra.mxu0 %v470
      %554 = vmatprep.subr.mxu0 %v467
      %555 = vmatpush1.msra.mxu0 %v466
      %556 = vmatprep.subr.mxu0 %v463
      %557 = vmatpush1.msra.mxu0 %v462
      %558 = vmatprep.subr.mxu0 %v459
      %559 = vmatpush1.msra.mxu0 %v458
      %560 = vmatprep.subr.mxu0 %v455
      %561 = vmatpush1.msra.mxu0 %v454
      %562 = vmatprep.subr.mxu0 %v451
      %563 = vmatpush1.msra.mxu0 %v450
      %564 = vmatprep.subr.mxu0 %v447
      %565 = vmatpush1.msra.mxu0 %v446
      %566 = vmatprep.subr.mxu0 %v443
      %567 = vmatpush1.msra.mxu0 %v442
      %568 = vmatprep.subr.mxu0 %v439
      %569 = vmatpush1.msra.mxu0 %v438
      %570 = vmatprep.subr.mxu0 %v435
      %571 = vmatpush1.msra.mxu0 %v434
      %572 = vmatprep.subr.mxu0 %v431
      %573 = vmatpush1.msra.mxu0 %v430
      %574 = vmatprep.subr.mxu0 %v427
      %575 = vmatpush1.msra.mxu0 %v426
      %576 = vmatprep.subr.mxu0 %v423
      %577 = vmatpush1.msra.mxu0 %v422
      %578 = vmatprep.subr.mxu0 %v419
      %579 = vmatpush1.msra.mxu0 %v418
      %580 = vmatprep.subr.mxu0 %v415
      %581 = vmatpush1.msra.mxu0 %v414
      %582 = vmatprep.subr.mxu0 0.0
      %583 = vmatpush2.msra.mxu0 0.0
      %584 = vmatprep.subr.mxu0 0.0
      %585 = vmatpush2.msra.mxu0 0.0
      %586 = vmatprep.subr.mxu0 0.0
      %587 = vmatpush2.msra.mxu0 0.0
      %588 = vmatprep.subr.mxu0 0.0
      %589 = vmatpush2.msra.mxu0 0.0
      %590 = vmatprep.subr.mxu0 0.0
      %591 = vmatpush2.msra.mxu0 0.0
      %592 = vmatprep.subr.mxu0 0.0
      %593 = vmatpush2.msra.mxu0 0.0
      %594 = vmatprep.subr.mxu0 0.0
      %595 = vmatpush2.msra.mxu0 0.0
      %596 = vmatprep.subr.mxu0 0.0
      %597 = vmatpush2.msra.mxu0 0.0
      %598 = vmatprep.subr.mxu0 0.0
      %599 = vmatpush2.msra.mxu0 0.0
      %600 = vmatprep.subr.mxu0 0.0
      %601 = vmatpush2.msra.mxu0 0.0
      %602 = vmatprep.subr.mxu0 0.0
      %603 = vmatpush2.msra.mxu0 0.0
      %604 = vmatprep.subr.mxu0 0.0
      %605 = vmatpush2.msra.mxu0 0.0
      %606 = vmatprep.subr.mxu0 0.0
      %607 = vmatpush2.msra.mxu0 0.0
      %608 = vmatprep.subr.mxu0 0.0
      %609 = vmatpush2.msra.mxu0 0.0
      %610 = vmatprep.subr.mxu0 0.0
      %611 = vmatpush2.msra.mxu0 0.0
      %612 = vmatprep.subr.mxu0 0.0
      %613 = vmatpush2.msra.mxu0 0.0
      %614 = vmatprep.mubr.f32.mxu0 0.0
      %615 = vmatmul.mubr.f32.gmra.mxu0 %v477
      %v616 = vpop.f32.mrf.mxu0
      %v617 = vadd.f32 0.0, %v616
      %v618 = vpop.f32.mrf.mxu0
      %v619 = vadd.f32 0.0, %v618
      %620 = vdwg.mxu0
      %v621 = vadd.f32 %v253, %v546
      %v622 = vadd.f32 %v255, %v548
      %v623 = vadd.f32 %v366, %v617
      %v624 = vadd.f32 %v368, %v619
      %v625 = vxor.u32 %v621, 2147483648
      %v626 = vmul.f32 %v625, 1.442695
      %v627 = vpow.pop %v626
      %v628 = vadd.f32 %v627, 1.0
      %v629 = vrcp.pop %v628
      %v630 = vmul.f32 1.0, %v629
      %v631 = vxor.u32 %v622, 2147483648
      %v632 = vmul.f32 %v631, 1.442695
      %v633 = vpow.pop %v632
      %v634 = vadd.f32 %v633, 1.0
      %v635 = vrcp.pop %v634
      %v636 = vmul.f32 1.0, %v635
      %v637 = vtanh.pop %v623
      %v638 = vxor.u32 %v624, 2147483648
      %v639 = vmul.f32 %v638, 1.442695
      %v640 = vpow.pop %v639
      %v641 = vadd.f32 %v640, 1.0
      %v642 = vrcp.pop %v641
      %v643 = vmul.f32 1.0, %v642
      %v644 = vmul.f32 %v636, %v478
      %v645 = vmul.f32 %v630, %v637
      %v646 = vadd.f32 %v644, %v645
      %v647 = vtanh.pop %v646
      %v648 = vmul.f32 %v643, %v647
      %v649 = vstv %s68
      %vm650 = vcmp.lt.s32.totalorder %v649, %v476
      %v651 = vsel %vm650, 1, 0
      %652 = vset.pattern.permute.xlu0 0
      %653 = vperm.xlu0 %652, %v651
      %v654 = vpop.permute.xlu0 %653
      %vm655 = vcmp.eq.s32.totalorder %v654, 1
      %v656 = vsel %vm655, %v648, %v477
      %v657 = vsel %vm655, %v646, %v478
      %v658 = vsel %vm655, %v648, 0.0
      %659 = vst [vmem:[#allocation12] sm:$0xff] %v658
      %660 = vmatprep.subr.mxu0 %v473
      %661 = vmatpush1.msra.mxu0 %v472
      %662 = vmatprep.subr.mxu0 %v469
      %663 = vmatpush1.msra.mxu0 %v468
      %664 = vmatprep.subr.mxu0 %v465
      %665 = vmatpush1.msra.mxu0 %v464
      %666 = vmatprep.subr.mxu0 %v461
      %667 = vmatpush1.msra.mxu0 %v460
      %668 = vmatprep.subr.mxu0 %v457
      %669 = vmatpush1.msra.mxu0 %v456
      %670 = vmatprep.subr.mxu0 %v453
      %671 = vmatpush1.msra.mxu0 %v452
      %672 = vmatprep.subr.mxu0 %v449
      %673 = vmatpush1.msra.mxu0 %v448
      %674 = vmatprep.subr.mxu0 %v445
      %675 = vmatpush1.msra.mxu0 %v444
      %676 = vmatprep.subr.mxu0 %v441
      %677 = vmatpush1.msra.mxu0 %v440
      %678 = vmatprep.subr.mxu0 %v437
      %679 = vmatpush1.msra.mxu0 %v436
      %680 = vmatprep.subr.mxu0 %v433
      %681 = vmatpush1.msra.mxu0 %v432
      %682 = vmatprep.subr.mxu0 %v429
      %683 = vmatpush1.msra.mxu0 %v428
      %684 = vmatprep.subr.mxu0 %v425
      %685 = vmatpush1.msra.mxu0 %v424
      %686 = vmatprep.subr.mxu0 %v421
      %687 = vmatpush1.msra.mxu0 %v420
      %688 = vmatprep.subr.mxu0 %v417
      %689 = vmatpush1.msra.mxu0 %v416
      %690 = vmatprep.subr.mxu0 %v413
      %691 = vmatpush1.msra.mxu0 %v412
      %692 = vmatprep.subr.mxu0 0.0
      %693 = vmatpush2.msra.mxu0 0.0
      %694 = vmatprep.subr.mxu0 0.0
      %695 = vmatpush2.msra.mxu0 0.0
      %696 = vmatprep.subr.mxu0 0.0
      %697 = vmatpush2.msra.mxu0 0.0
      %698 = vmatprep.subr.mxu0 0.0
      %699 = vmatpush2.msra.mxu0 0.0
      %700 = vmatprep.subr.mxu0 0.0
      %701 = vmatpush2.msra.mxu0 0.0
      %702 = vmatprep.subr.mxu0 0.0
      %703 = vmatpush2.msra.mxu0 0.0
      %704 = vmatprep.subr.mxu0 0.0
      %705 = vmatpush2.msra.mxu0 0.0
      %706 = vmatprep.subr.mxu0 0.0
      %707 = vmatpush2.msra.mxu0 0.0
      %708 = vmatprep.subr.mxu0 0.0
      %709 = vmatpush2.msra.mxu0 0.0
      %710 = vmatprep.subr.mxu0 0.0
      %711 = vmatpush2.msra.mxu0 0.0
      %712 = vmatprep.subr.mxu0 0.0
      %713 = vmatpush2.msra.mxu0 0.0
      %714 = vmatprep.subr.mxu0 0.0
      %715 = vmatpush2.msra.mxu0 0.0
      %716 = vmatprep.subr.mxu0 0.0
      %717 = vmatpush2.msra.mxu0 0.0
      %718 = vmatprep.subr.mxu0 0.0
      %719 = vmatpush2.msra.mxu0 0.0
      %720 = vmatprep.subr.mxu0 0.0
      %721 = vmatpush2.msra.mxu0 0.0
      %722 = vmatprep.subr.mxu0 0.0
      %723 = vmatpush2.msra.mxu0 0.0
      %724 = vmatprep.mubr.f32.mxu0 0.0
      %725 = vmatmul.mubr.f32.gmra.mxu0 %v656
      %v726 = vpop.f32.mrf.mxu0
      %v727 = vadd.f32 0.0, %v726
      %v728 = vpop.f32.mrf.mxu0
      %v729 = vadd.f32 0.0, %v728
      %730 = vdwg.mxu0
      %731 = vmatprep.subr.mxu0 %v475
      %732 = vmatpush1.msra.mxu0 %v474
      %733 = vmatprep.subr.mxu0 %v471
      %734 = vmatpush1.msra.mxu0 %v470
      %735 = vmatprep.subr.mxu0 %v467
      %736 = vmatpush1.msra.mxu0 %v466
      %737 = vmatprep.subr.mxu0 %v463
      %738 = vmatpush1.msra.mxu0 %v462
      %739 = vmatprep.subr.mxu0 %v459
      %740 = vmatpush1.msra.mxu0 %v458
      %741 = vmatprep.subr.mxu0 %v455
      %742 = vmatpush1.msra.mxu0 %v454
      %743 = vmatprep.subr.mxu0 %v451
      %744 = vmatpush1.msra.mxu0 %v450
      %745 = vmatprep.subr.mxu0 %v447
      %746 = vmatpush1.msra.mxu0 %v446
      %747 = vmatprep.subr.mxu0 %v443
      %748 = vmatpush1.msra.mxu0 %v442
      %749 = vmatprep.subr.mxu0 %v439
      %750 = vmatpush1.msra.mxu0 %v438
      %751 = vmatprep.subr.mxu0 %v435
      %752 = vmatpush1.msra.mxu0 %v434
      %753 = vmatprep.subr.mxu0 %v431
      %754 = vmatpush1.msra.mxu0 %v430
      %755 = vmatprep.subr.mxu0 %v427
      %756 = vmatpush1.msra.mxu0 %v426
      %757 = vmatprep.subr.mxu0 %v423
      %758 = vmatpush1.msra.mxu0 %v422
      %759 = vmatprep.subr.mxu0 %v419
      %760 = vmatpush1.msra.mxu0 %v418
      %761 = vmatprep.subr.mxu0 %v415
      %762 = vmatpush1.msra.mxu0 %v414
      %763 = vmatprep.subr.mxu0 0.0
      %764 = vmatpush2.msra.mxu0 0.0
      %765 = vmatprep.subr.mxu0 0.0
      %766 = vmatpush2.msra.mxu0 0.0
      %767 = vmatprep.subr.mxu0 0.0
      %768 = vmatpush2.msra.mxu0 0.0
      %769 = vmatprep.subr.mxu0 0.0
      %770 = vmatpush2.msra.mxu0 0.0
      %771 = vmatprep.subr.mxu0 0.0
      %772 = vmatpush2.msra.mxu0 0.0
      %773 = vmatprep.subr.mxu0 0.0
      %774 = vmatpush2.msra.mxu0 0.0
      %775 = vmatprep.subr.mxu0 0.0
      %776 = vmatpush2.msra.mxu0 0.0
      %777 = vmatprep.subr.mxu0 0.0
      %778 = vmatpush2.msra.mxu0 0.0
      %779 = vmatprep.subr.mxu0 0.0
      %780 = vmatpush2.msra.mxu0 0.0
      %781 = vmatprep.subr.mxu0 0.0
      %782 = vmatpush2.msra.mxu0 0.0
      %783 = vmatprep.subr.mxu0 0.0
      %784 = vmatpush2.msra.mxu0 0.0
      %785 = vmatprep.subr.mxu0 0.0
      %786 = vmatpush2.msra.mxu0 0.0
      %787 = vmatprep.subr.mxu0 0.0
      %788 = vmatpush2.msra.mxu0 0.0
      %789 = vmatprep.subr.mxu0 0.0
      %790 = vmatpush2.msra.mxu0 0.0
      %791 = vmatprep.subr.mxu0 0.0
      %792 = vmatpush2.msra.mxu0 0.0
      %793 = vmatprep.subr.mxu0 0.0
      %794 = vmatpush2.msra.mxu0 0.0
      %795 = vmatprep.mubr.f32.mxu0 0.0
      %796 = vmatmul.mubr.f32.gmra.mxu0 %v656
      %v797 = vpop.f32.mrf.mxu0
      %v798 = vadd.f32 0.0, %v797
      %v799 = vpop.f32.mrf.mxu0
      %v800 = vadd.f32 0.0, %v799
      %801 = vdwg.mxu0
      %v802 = vadd.f32 %v259, %v727
      %v803 = vadd.f32 %v261, %v729
      %v804 = vadd.f32 %v372, %v798
      %v805 = vadd.f32 %v374, %v800
      %v806 = vxor.u32 %v802, 2147483648
      %v807 = vmul.f32 %v806, 1.442695
      %v808 = vpow.pop %v807
      %v809 = vadd.f32 %v808, 1.0
      %v810 = vrcp.pop %v809
      %v811 = vmul.f32 1.0, %v810
      %v812 = vxor.u32 %v803, 2147483648
      %v813 = vmul.f32 %v812, 1.442695
      %v814 = vpow.pop %v813
      %v815 = vadd.f32 %v814, 1.0
      %v816 = vrcp.pop %v815
      %v817 = vmul.f32 1.0, %v816
      %v818 = vtanh.pop %v804
      %v819 = vxor.u32 %v805, 2147483648
      %v820 = vmul.f32 %v819, 1.442695
      %v821 = vpow.pop %v820
      %v822 = vadd.f32 %v821, 1.0
      %v823 = vrcp.pop %v822
      %v824 = vmul.f32 1.0, %v823
      %v825 = vmul.f32 %v817, %v657
      %v826 = vmul.f32 %v811, %v818
      %v827 = vadd.f32 %v825, %v826
      %v828 = vtanh.pop %v827
      %v829 = vmul.f32 %v824, %v828
      %s830 = sadd.s32 %s68, 1
      %v831 = vstv %s830
      %vm832 = vcmp.lt.s32.totalorder %v831, %v476
      %v833 = vsel %vm832, 1, 0
      %834 = vset.pattern.permute.xlu0 0
      %835 = vperm.xlu0 %834, %v833
      %v836 = vpop.permute.xlu0 %835
      %vm837 = vcmp.eq.s32.totalorder %v836, 1
      %v838 = vsel %vm837, %v829, %v656
      %v839 = vsel %vm837, %v827, %v657
      %v840 = vsel %vm837, %v829, 0.0
      %s841 = scalar_lea.vmem [#allocation12], 8
      %842 = vst [vmem:[%s841] sm:$0xff] %v840
      %843 = vmatprep.subr.mxu0 %v473
      %844 = vmatpush1.msra.mxu0 %v472
      %845 = vmatprep.subr.mxu0 %v469
      %846 = vmatpush1.msra.mxu0 %v468
      %847 = vmatprep.subr.mxu0 %v465
      %848 = vmatpush1.msra.mxu0 %v464
      %849 = vmatprep.subr.mxu0 %v461
      %850 = vmatpush1.msra.mxu0 %v460
      %851 = vmatprep.subr.mxu0 %v457
      %852 = vmatpush1.msra.mxu0 %v456
      %853 = vmatprep.subr.mxu0 %v453
      %854 = vmatpush1.msra.mxu0 %v452
      %855 = vmatprep.subr.mxu0 %v449
      %856 = vmatpush1.msra.mxu0 %v448
      %857 = vmatprep.subr.mxu0 %v445
      %858 = vmatpush1.msra.mxu0 %v444
      %859 = vmatprep.subr.mxu0 %v441
      %860 = vmatpush1.msra.mxu0 %v440
      %861 = vmatprep.subr.mxu0 %v437
      %862 = vmatpush1.msra.mxu0 %v436
      %863 = vmatprep.subr.mxu0 %v433
      %864 = vmatpush1.msra.mxu0 %v432
      %865 = vmatprep.subr.mxu0 %v429
      %866 = vmatpush1.msra.mxu0 %v428
      %867 = vmatprep.subr.mxu0 %v425
      %868 = vmatpush1.msra.mxu0 %v424
      %869 = vmatprep.subr.mxu0 %v421
      %870 = vmatpush1.msra.mxu0 %v420
      %871 = vmatprep.subr.mxu0 %v417
      %872 = vmatpush1.msra.mxu0 %v416
      %873 = vmatprep.subr.mxu0 %v413
      %874 = vmatpush1.msra.mxu0 %v412
      %875 = vmatprep.subr.mxu0 0.0
      %876 = vmatpush2.msra.mxu0 0.0
      %877 = vmatprep.subr.mxu0 0.0
      %878 = vmatpush2.msra.mxu0 0.0
      %879 = vmatprep.subr.mxu0 0.0
      %880 = vmatpush2.msra.mxu0 0.0
      %881 = vmatprep.subr.mxu0 0.0
      %882 = vmatpush2.msra.mxu0 0.0
      %883 = vmatprep.subr.mxu0 0.0
      %884 = vmatpush2.msra.mxu0 0.0
      %885 = vmatprep.subr.mxu0 0.0
      %886 = vmatpush2.msra.mxu0 0.0
      %887 = vmatprep.subr.mxu0 0.0
      %888 = vmatpush2.msra.mxu0 0.0
      %889 = vmatprep.subr.mxu0 0.0
      %890 = vmatpush2.msra.mxu0 0.0
      %891 = vmatprep.subr.mxu0 0.0
      %892 = vmatpush2.msra.mxu0 0.0
      %893 = vmatprep.subr.mxu0 0.0
      %894 = vmatpush2.msra.mxu0 0.0
      %895 = vmatprep.subr.mxu0 0.0
      %896 = vmatpush2.msra.mxu0 0.0
      %897 = vmatprep.subr.mxu0 0.0
      %898 = vmatpush2.msra.mxu0 0.0
      %899 = vmatprep.subr.mxu0 0.0
      %900 = vmatpush2.msra.mxu0 0.0
      %901 = vmatprep.subr.mxu0 0.0
      %902 = vmatpush2.msra.mxu0 0.0
      %903 = vmatprep.subr.mxu0 0.0
      %904 = vmatpush2.msra.mxu0 0.0
      %905 = vmatprep.subr.mxu0 0.0
      %906 = vmatpush2.msra.mxu0 0.0
      %907 = vmatprep.mubr.f32.mxu0 0.0
      %908 = vmatmul.mubr.f32.gmra.mxu0 %v838
      %v909 = vpop.f32.mrf.mxu0
      %v910 = vadd.f32 0.0, %v909
      %v911 = vpop.f32.mrf.mxu0
      %v912 = vadd.f32 0.0, %v911
      %913 = vdwg.mxu0
      %914 = vmatprep.subr.mxu0 %v475
      %915 = vmatpush1.msra.mxu0 %v474
      %916 = vmatprep.subr.mxu0 %v471
      %917 = vmatpush1.msra.mxu0 %v470
      %918 = vmatprep.subr.mxu0 %v467
      %919 = vmatpush1.msra.mxu0 %v466
      %920 = vmatprep.subr.mxu0 %v463
      %921 = vmatpush1.msra.mxu0 %v462
      %922 = vmatprep.subr.mxu0 %v459
      %923 = vmatpush1.msra.mxu0 %v458
      %924 = vmatprep.subr.mxu0 %v455
      %925 = vmatpush1.msra.mxu0 %v454
      %926 = vmatprep.subr.mxu0 %v451
      %927 = vmatpush1.msra.mxu0 %v450
      %928 = vmatprep.subr.mxu0 %v447
      %929 = vmatpush1.msra.mxu0 %v446
      %930 = vmatprep.subr.mxu0 %v443
      %931 = vmatpush1.msra.mxu0 %v442
      %932 = vmatprep.subr.mxu0 %v439
      %933 = vmatpush1.msra.mxu0 %v438
      %934 = vmatprep.subr.mxu0 %v435
      %935 = vmatpush1.msra.mxu0 %v434
      %936 = vmatprep.subr.mxu0 %v431
      %937 = vmatpush1.msra.mxu0 %v430
      %938 = vmatprep.subr.mxu0 %v427
      %939 = vmatpush1.msra.mxu0 %v426
      %940 = vmatprep.subr.mxu0 %v423
      %941 = vmatpush1.msra.mxu0 %v422
      %942 = vmatprep.subr.mxu0 %v419
      %943 = vmatpush1.msra.mxu0 %v418
      %944 = vmatprep.subr.mxu0 %v415
      %945 = vmatpush1.msra.mxu0 %v414
      %946 = vmatprep.subr.mxu0 0.0
      %947 = vmatpush2.msra.mxu0 0.0
      %948 = vmatprep.subr.mxu0 0.0
      %949 = vmatpush2.msra.mxu0 0.0
      %950 = vmatprep.subr.mxu0 0.0
      %951 = vmatpush2.msra.mxu0 0.0
      %952 = vmatprep.subr.mxu0 0.0
      %953 = vmatpush2.msra.mxu0 0.0
      %954 = vmatprep.subr.mxu0 0.0
      %955 = vmatpush2.msra.mxu0 0.0
      %956 = vmatprep.subr.mxu0 0.0
      %957 = vmatpush2.msra.mxu0 0.0
      %958 = vmatprep.subr.mxu0 0.0
      %959 = vmatpush2.msra.mxu0 0.0
      %960 = vmatprep.subr.mxu0 0.0
      %961 = vmatpush2.msra.mxu0 0.0
      %962 = vmatprep.subr.mxu0 0.0
      %963 = vmatpush2.msra.mxu0 0.0
      %964 = vmatprep.subr.mxu0 0.0
      %965 = vmatpush2.msra.mxu0 0.0
      %966 = vmatprep.subr.mxu0 0.0
      %967 = vmatpush2.msra.mxu0 0.0
      %968 = vmatprep.subr.mxu0 0.0
      %969 = vmatpush2.msra.mxu0 0.0
      %970 = vmatprep.subr.mxu0 0.0
      %971 = vmatpush2.msra.mxu0 0.0
      %972 = vmatprep.subr.mxu0 0.0
      %973 = vmatpush2.msra.mxu0 0.0
      %974 = vmatprep.subr.mxu0 0.0
      %975 = vmatpush2.msra.mxu0 0.0
      %976 = vmatprep.subr.mxu0 0.0
      %977 = vmatpush2.msra.mxu0 0.0
      %978 = vmatprep.mubr.f32.mxu0 0.0
      %979 = vmatmul.mubr.f32.gmra.mxu0 %v838
      %v980 = vpop.f32.mrf.mxu0
      %v981 = vadd.f32 0.0, %v980
      %v982 = vpop.f32.mrf.mxu0
      %v983 = vadd.f32 0.0, %v982
      %984 = vdwg.mxu0
      %v985 = vadd.f32 %v265, %v910
      %v986 = vadd.f32 %v267, %v912
      %v987 = vadd.f32 %v378, %v981
      %v988 = vadd.f32 %v380, %v983
      %v989 = vxor.u32 %v985, 2147483648
      %v990 = vmul.f32 %v989, 1.442695
      %v991 = vpow.pop %v990
      %v992 = vadd.f32 %v991, 1.0
      %v993 = vrcp.pop %v992
      %v994 = vmul.f32 1.0, %v993
      %v995 = vxor.u32 %v986, 2147483648
      %v996 = vmul.f32 %v995, 1.442695
      %v997 = vpow.pop %v996
      %v998 = vadd.f32 %v997, 1.0
      %v999 = vrcp.pop %v998
      %v1000 = vmul.f32 1.0, %v999
      %v1001 = vtanh.pop %v987
      %v1002 = vxor.u32 %v988, 2147483648
      %v1003 = vmul.f32 %v1002, 1.442695
      %v1004 = vpow.pop %v1003
      %v1005 = vadd.f32 %v1004, 1.0
      %v1006 = vrcp.pop %v1005
      %v1007 = vmul.f32 1.0, %v1006
      %v1008 = vmul.f32 %v1000, %v839
      %v1009 = vmul.f32 %v994, %v1001
      %v1010 = vadd.f32 %v1008, %v1009
      %v1011 = vtanh.pop %v1010
      %v1012 = vmul.f32 %v1007, %v1011
      %s1013 = sadd.s32 %s68, 2
      %v1014 = vstv %s1013
      %vm1015 = vcmp.lt.s32.totalorder %v1014, %v476
      %v1016 = vsel %vm1015, 1, 0
      %1017 = vset.pattern.permute.xlu0 0
      %1018 = vperm.xlu0 %1017, %v1016
      %v1019 = vpop.permute.xlu0 %1018
      %vm1020 = vcmp.eq.s32.totalorder %v1019, 1
      %v1021 = vsel %vm1020, %v1012, %v838
      %v1022 = vsel %vm1020, %v1010, %v839
      %v1023 = vsel %vm1020, %v1012, 0.0
      %s1024 = scalar_lea.vmem [#allocation12], 16
      %1025 = vst [vmem:[%s1024] sm:$0xff] %v1023
      %1026 = vmatprep.subr.mxu0 %v473
      %1027 = vmatpush1.msra.mxu0 %v472
      %1028 = vmatprep.subr.mxu0 %v469
      %1029 = vmatpush1.msra.mxu0 %v468
      %1030 = vmatprep.subr.mxu0 %v465
      %1031 = vmatpush1.msra.mxu0 %v464
      %1032 = vmatprep.subr.mxu0 %v461
      %1033 = vmatpush1.msra.mxu0 %v460
      %1034 = vmatprep.subr.mxu0 %v457
      %1035 = vmatpush1.msra.mxu0 %v456
      %1036 = vmatprep.subr.mxu0 %v453
      %1037 = vmatpush1.msra.mxu0 %v452
      %1038 = vmatprep.subr.mxu0 %v449
      %1039 = vmatpush1.msra.mxu0 %v448
      %1040 = vmatprep.subr.mxu0 %v445
      %1041 = vmatpush1.msra.mxu0 %v444
      %1042 = vmatprep.subr.mxu0 %v441
      %1043 = vmatpush1.msra.mxu0 %v440
      %1044 = vmatprep.subr.mxu0 %v437
      %1045 = vmatpush1.msra.mxu0 %v436
      %1046 = vmatprep.subr.mxu0 %v433
      %1047 = vmatpush1.msra.mxu0 %v432
      %1048 = vmatprep.subr.mxu0 %v429
      %1049 = vmatpush1.msra.mxu0 %v428
      %1050 = vmatprep.subr.mxu0 %v425
      %1051 = vmatpush1.msra.mxu0 %v424
      %1052 = vmatprep.subr.mxu0 %v421
      %1053 = vmatpush1.msra.mxu0 %v420
      %1054 = vmatprep.subr.mxu0 %v417
      %1055 = vmatpush1.msra.mxu0 %v416
      %1056 = vmatprep.subr.mxu0 %v413
      %1057 = vmatpush1.msra.mxu0 %v412
      %1058 = vmatprep.subr.mxu0 0.0
      %1059 = vmatpush2.msra.mxu0 0.0
      %1060 = vmatprep.subr.mxu0 0.0
      %1061 = vmatpush2.msra.mxu0 0.0
      %1062 = vmatprep.subr.mxu0 0.0
      %1063 = vmatpush2.msra.mxu0 0.0
      %1064 = vmatprep.subr.mxu0 0.0
      %1065 = vmatpush2.msra.mxu0 0.0
      %1066 = vmatprep.subr.mxu0 0.0
      %1067 = vmatpush2.msra.mxu0 0.0
      %1068 = vmatprep.subr.mxu0 0.0
      %1069 = vmatpush2.msra.mxu0 0.0
      %1070 = vmatprep.subr.mxu0 0.0
      %1071 = vmatpush2.msra.mxu0 0.0
      %1072 = vmatprep.subr.mxu0 0.0
      %1073 = vmatpush2.msra.mxu0 0.0
      %1074 = vmatprep.subr.mxu0 0.0
      %1075 = vmatpush2.msra.mxu0 0.0
      %1076 = vmatprep.subr.mxu0 0.0
      %1077 = vmatpush2.msra.mxu0 0.0
      %1078 = vmatprep.subr.mxu0 0.0
      %1079 = vmatpush2.msra.mxu0 0.0
      %1080 = vmatprep.subr.mxu0 0.0
      %1081 = vmatpush2.msra.mxu0 0.0
      %1082 = vmatprep.subr.mxu0 0.0
      %1083 = vmatpush2.msra.mxu0 0.0
      %1084 = vmatprep.subr.mxu0 0.0
      %1085 = vmatpush2.msra.mxu0 0.0
      %1086 = vmatprep.subr.mxu0 0.0
      %1087 = vmatpush2.msra.mxu0 0.0
      %1088 = vmatprep.subr.mxu0 0.0
      %1089 = vmatpush2.msra.mxu0 0.0
      %1090 = vmatprep.mubr.f32.mxu0 0.0
      %1091 = vmatmul.mubr.f32.gmra.mxu0 %v1021
      %v1092 = vpop.f32.mrf.mxu0
      %v1093 = vadd.f32 0.0, %v1092
      %v1094 = vpop.f32.mrf.mxu0
      %v1095 = vadd.f32 0.0, %v1094
      %1096 = vdwg.mxu0
      %1097 = vmatprep.subr.mxu0 %v475
      %1098 = vmatpush1.msra.mxu0 %v474
      %1099 = vmatprep.subr.mxu0 %v471
      %1100 = vmatpush1.msra.mxu0 %v470
      %1101 = vmatprep.subr.mxu0 %v467
      %1102 = vmatpush1.msra.mxu0 %v466
      %1103 = vmatprep.subr.mxu0 %v463
      %1104 = vmatpush1.msra.mxu0 %v462
      %1105 = vmatprep.subr.mxu0 %v459
      %1106 = vmatpush1.msra.mxu0 %v458
      %1107 = vmatprep.subr.mxu0 %v455
      %1108 = vmatpush1.msra.mxu0 %v454
      %1109 = vmatprep.subr.mxu0 %v451
      %1110 = vmatpush1.msra.mxu0 %v450
      %1111 = vmatprep.subr.mxu0 %v447
      %1112 = vmatpush1.msra.mxu0 %v446
      %1113 = vmatprep.subr.mxu0 %v443
      %1114 = vmatpush1.msra.mxu0 %v442
      %1115 = vmatprep.subr.mxu0 %v439
      %1116 = vmatpush1.msra.mxu0 %v438
      %1117 = vmatprep.subr.mxu0 %v435
      %1118 = vmatpush1.msra.mxu0 %v434
      %1119 = vmatprep.subr.mxu0 %v431
      %1120 = vmatpush1.msra.mxu0 %v430
      %1121 = vmatprep.subr.mxu0 %v427
      %1122 = vmatpush1.msra.mxu0 %v426
      %1123 = vmatprep.subr.mxu0 %v423
      %1124 = vmatpush1.msra.mxu0 %v422
      %1125 = vmatprep.subr.mxu0 %v419
      %1126 = vmatpush1.msra.mxu0 %v418
      %1127 = vmatprep.subr.mxu0 %v415
      %1128 = vmatpush1.msra.mxu0 %v414
      %1129 = vmatprep.subr.mxu0 0.0
      %1130 = vmatpush2.msra.mxu0 0.0
      %1131 = vmatprep.subr.mxu0 0.0
      %1132 = vmatpush2.msra.mxu0 0.0
      %1133 = vmatprep.subr.mxu0 0.0
      %1134 = vmatpush2.msra.mxu0 0.0
      %1135 = vmatprep.subr.mxu0 0.0
      %1136 = vmatpush2.msra.mxu0 0.0
      %1137 = vmatprep.subr.mxu0 0.0
      %1138 = vmatpush2.msra.mxu0 0.0
      %1139 = vmatprep.subr.mxu0 0.0
      %1140 = vmatpush2.msra.mxu0 0.0
      %1141 = vmatprep.subr.mxu0 0.0
      %1142 = vmatpush2.msra.mxu0 0.0
      %1143 = vmatprep.subr.mxu0 0.0
      %1144 = vmatpush2.msra.mxu0 0.0
      %1145 = vmatprep.subr.mxu0 0.0
      %1146 = vmatpush2.msra.mxu0 0.0
      %1147 = vmatprep.subr.mxu0 0.0
      %1148 = vmatpush2.msra.mxu0 0.0
      %1149 = vmatprep.subr.mxu0 0.0
      %1150 = vmatpush2.msra.mxu0 0.0
      %1151 = vmatprep.subr.mxu0 0.0
      %1152 = vmatpush2.msra.mxu0 0.0
      %1153 = vmatprep.subr.mxu0 0.0
      %1154 = vmatpush2.msra.mxu0 0.0
      %1155 = vmatprep.subr.mxu0 0.0
      %1156 = vmatpush2.msra.mxu0 0.0
      %1157 = vmatprep.subr.mxu0 0.0
      %1158 = vmatpush2.msra.mxu0 0.0
      %1159 = vmatprep.subr.mxu0 0.0
      %1160 = vmatpush2.msra.mxu0 0.0
      %1161 = vmatprep.mubr.f32.mxu0 0.0
      %1162 = vmatmul.mubr.f32.gmra.mxu0 %v1021
      %v1163 = vpop.f32.mrf.mxu0
      %v1164 = vadd.f32 0.0, %v1163
      %v1165 = vpop.f32.mrf.mxu0
      %v1166 = vadd.f32 0.0, %v1165
      %1167 = vdwg.mxu0
      %v1168 = vadd.f32 %v271, %v1093
      %v1169 = vadd.f32 %v273, %v1095
      %v1170 = vadd.f32 %v384, %v1164
      %v1171 = vadd.f32 %v386, %v1166
      %v1172 = vxor.u32 %v1168, 2147483648
      %v1173 = vmul.f32 %v1172, 1.442695
      %v1174 = vpow.pop %v1173
      %v1175 = vadd.f32 %v1174, 1.0
      %v1176 = vrcp.pop %v1175
      %v1177 = vmul.f32 1.0, %v1176
      %v1178 = vxor.u32 %v1169, 2147483648
      %v1179 = vmul.f32 %v1178, 1.442695
      %v1180 = vpow.pop %v1179
      %v1181 = vadd.f32 %v1180, 1.0
      %v1182 = vrcp.pop %v1181
      %v1183 = vmul.f32 1.0, %v1182
      %v1184 = vtanh.pop %v1170
      %v1185 = vxor.u32 %v1171, 2147483648
      %v1186 = vmul.f32 %v1185, 1.442695
      %v1187 = vpow.pop %v1186
      %v1188 = vadd.f32 %v1187, 1.0
      %v1189 = vrcp.pop %v1188
      %v1190 = vmul.f32 1.0, %v1189
      %v1191 = vmul.f32 %v1183, %v1022
      %v1192 = vmul.f32 %v1177, %v1184
      %v1193 = vadd.f32 %v1191, %v1192
      %v1194 = vtanh.pop %v1193
      %v1195 = vmul.f32 %v1190, %v1194
      %s1196 = sadd.s32 %s68, 3
      %v1197 = vstv %s1196
      %vm1198 = vcmp.lt.s32.totalorder %v1197, %v476
      %v1199 = vsel %vm1198, 1, 0
      %1200 = vset.pattern.permute.xlu0 0
      %1201 = vperm.xlu0 %1200, %v1199
      %v1202 = vpop.permute.xlu0 %1201
      %vm1203 = vcmp.eq.s32.totalorder %v1202, 1
      %v1204 = vsel %vm1203, %v1195, %v1021
      %v1205 = vsel %vm1203, %v1193, %v1022
      %v1206 = vsel %vm1203, %v1195, 0.0
      %s1207 = scalar_lea.vmem [#allocation12], 24
      %1208 = vst [vmem:[%s1207] sm:$0xff] %v1206
      %1209 = vmatprep.subr.mxu0 %v473
      %1210 = vmatpush1.msra.mxu0 %v472
      %1211 = vmatprep.subr.mxu0 %v469
      %1212 = vmatpush1.msra.mxu0 %v468
      %1213 = vmatprep.subr.mxu0 %v465
      %1214 = vmatpush1.msra.mxu0 %v464
      %1215 = vmatprep.subr.mxu0 %v461
      %1216 = vmatpush1.msra.mxu0 %v460
      %1217 = vmatprep.subr.mxu0 %v457
      %1218 = vmatpush1.msra.mxu0 %v456
      %1219 = vmatprep.subr.mxu0 %v453
      %1220 = vmatpush1.msra.mxu0 %v452
      %1221 = vmatprep.subr.mxu0 %v449
      %1222 = vmatpush1.msra.mxu0 %v448
      %1223 = vmatprep.subr.mxu0 %v445
      %1224 = vmatpush1.msra.mxu0 %v444
      %1225 = vmatprep.subr.mxu0 %v441
      %1226 = vmatpush1.msra.mxu0 %v440
      %1227 = vmatprep.subr.mxu0 %v437
      %1228 = vmatpush1.msra.mxu0 %v436
      %1229 = vmatprep.subr.mxu0 %v433
      %1230 = vmatpush1.msra.mxu0 %v432
      %1231 = vmatprep.subr.mxu0 %v429
      %1232 = vmatpush1.msra.mxu0 %v428
      %1233 = vmatprep.subr.mxu0 %v425
      %1234 = vmatpush1.msra.mxu0 %v424
      %1235 = vmatprep.subr.mxu0 %v421
      %1236 = vmatpush1.msra.mxu0 %v420
      %1237 = vmatprep.subr.mxu0 %v417
      %1238 = vmatpush1.msra.mxu0 %v416
      %1239 = vmatprep.subr.mxu0 %v413
      %1240 = vmatpush1.msra.mxu0 %v412
      %1241 = vmatprep.subr.mxu0 0.0
      %1242 = vmatpush2.msra.mxu0 0.0
      %1243 = vmatprep.subr.mxu0 0.0
      %1244 = vmatpush2.msra.mxu0 0.0
      %1245 = vmatprep.subr.mxu0 0.0
      %1246 = vmatpush2.msra.mxu0 0.0
      %1247 = vmatprep.subr.mxu0 0.0
      %1248 = vmatpush2.msra.mxu0 0.0
      %1249 = vmatprep.subr.mxu0 0.0
      %1250 = vmatpush2.msra.mxu0 0.0
      %1251 = vmatprep.subr.mxu0 0.0
      %1252 = vmatpush2.msra.mxu0 0.0
      %1253 = vmatprep.subr.mxu0 0.0
      %1254 = vmatpush2.msra.mxu0 0.0
      %1255 = vmatprep.subr.mxu0 0.0
      %1256 = vmatpush2.msra.mxu0 0.0
      %1257 = vmatprep.subr.mxu0 0.0
      %1258 = vmatpush2.msra.mxu0 0.0
      %1259 = vmatprep.subr.mxu0 0.0
      %1260 = vmatpush2.msra.mxu0 0.0
      %1261 = vmatprep.subr.mxu0 0.0
      %1262 = vmatpush2.msra.mxu0 0.0
      %1263 = vmatprep.subr.mxu0 0.0
      %1264 = vmatpush2.msra.mxu0 0.0
      %1265 = vmatprep.subr.mxu0 0.0
      %1266 = vmatpush2.msra.mxu0 0.0
      %1267 = vmatprep.subr.mxu0 0.0
      %1268 = vmatpush2.msra.mxu0 0.0
      %1269 = vmatprep.subr.mxu0 0.0
      %1270 = vmatpush2.msra.mxu0 0.0
      %1271 = vmatprep.subr.mxu0 0.0
      %1272 = vmatpush2.msra.mxu0 0.0
      %1273 = vmatprep.mubr.f32.mxu0 0.0
      %1274 = vmatmul.mubr.f32.gmra.mxu0 %v1204
      %v1275 = vpop.f32.mrf.mxu0
      %v1276 = vadd.f32 0.0, %v1275
      %v1277 = vpop.f32.mrf.mxu0
      %v1278 = vadd.f32 0.0, %v1277
      %1279 = vdwg.mxu0
      %1280 = vmatprep.subr.mxu0 %v475
      %1281 = vmatpush1.msra.mxu0 %v474
      %1282 = vmatprep.subr.mxu0 %v471
      %1283 = vmatpush1.msra.mxu0 %v470
      %1284 = vmatprep.subr.mxu0 %v467
      %1285 = vmatpush1.msra.mxu0 %v466
      %1286 = vmatprep.subr.mxu0 %v463
      %1287 = vmatpush1.msra.mxu0 %v462
      %1288 = vmatprep.subr.mxu0 %v459
      %1289 = vmatpush1.msra.mxu0 %v458
      %1290 = vmatprep.subr.mxu0 %v455
      %1291 = vmatpush1.msra.mxu0 %v454
      %1292 = vmatprep.subr.mxu0 %v451
      %1293 = vmatpush1.msra.mxu0 %v450
      %1294 = vmatprep.subr.mxu0 %v447
      %1295 = vmatpush1.msra.mxu0 %v446
      %1296 = vmatprep.subr.mxu0 %v443
      %1297 = vmatpush1.msra.mxu0 %v442
      %1298 = vmatprep.subr.mxu0 %v439
      %1299 = vmatpush1.msra.mxu0 %v438
      %1300 = vmatprep.subr.mxu0 %v435
      %1301 = vmatpush1.msra.mxu0 %v434
      %1302 = vmatprep.subr.mxu0 %v431
      %1303 = vmatpush1.msra.mxu0 %v430
      %1304 = vmatprep.subr.mxu0 %v427
      %1305 = vmatpush1.msra.mxu0 %v426
      %1306 = vmatprep.subr.mxu0 %v423
      %1307 = vmatpush1.msra.mxu0 %v422
      %1308 = vmatprep.subr.mxu0 %v419
      %1309 = vmatpush1.msra.mxu0 %v418
      %1310 = vmatprep.subr.mxu0 %v415
      %1311 = vmatpush1.msra.mxu0 %v414
      %1312 = vmatprep.subr.mxu0 0.0
      %1313 = vmatpush2.msra.mxu0 0.0
      %1314 = vmatprep.subr.mxu0 0.0
      %1315 = vmatpush2.msra.mxu0 0.0
      %1316 = vmatprep.subr.mxu0 0.0
      %1317 = vmatpush2.msra.mxu0 0.0
      %1318 = vmatprep.subr.mxu0 0.0
      %1319 = vmatpush2.msra.mxu0 0.0
      %1320 = vmatprep.subr.mxu0 0.0
      %1321 = vmatpush2.msra.mxu0 0.0
      %1322 = vmatprep.subr.mxu0 0.0
      %1323 = vmatpush2.msra.mxu0 0.0
      %1324 = vmatprep.subr.mxu0 0.0
      %1325 = vmatpush2.msra.mxu0 0.0
      %1326 = vmatprep.subr.mxu0 0.0
      %1327 = vmatpush2.msra.mxu0 0.0
      %1328 = vmatprep.subr.mxu0 0.0
      %1329 = vmatpush2.msra.mxu0 0.0
      %1330 = vmatprep.subr.mxu0 0.0
      %1331 = vmatpush2.msra.mxu0 0.0
      %1332 = vmatprep.subr.mxu0 0.0
      %1333 = vmatpush2.msra.mxu0 0.0
      %1334 = vmatprep.subr.mxu0 0.0
      %1335 = vmatpush2.msra.mxu0 0.0
      %1336 = vmatprep.subr.mxu0 0.0
      %1337 = vmatpush2.msra.mxu0 0.0
      %1338 = vmatprep.subr.mxu0 0.0
      %1339 = vmatpush2.msra.mxu0 0.0
      %1340 = vmatprep.subr.mxu0 0.0
      %1341 = vmatpush2.msra.mxu0 0.0
      %1342 = vmatprep.subr.mxu0 0.0
      %1343 = vmatpush2.msra.mxu0 0.0
      %1344 = vmatprep.mubr.f32.mxu0 0.0
      %1345 = vmatmul.mubr.f32.gmra.mxu0 %v1204
      %v1346 = vpop.f32.mrf.mxu0
      %v1347 = vadd.f32 0.0, %v1346
      %v1348 = vpop.f32.mrf.mxu0
      %v1349 = vadd.f32 0.0, %v1348
      %1350 = vdwg.mxu0
      %v1351 = vadd.f32 %v277, %v1276
      %v1352 = vadd.f32 %v279, %v1278
      %v1353 = vadd.f32 %v390, %v1347
      %v1354 = vadd.f32 %v392, %v1349
      %v1355 = vxor.u32 %v1351, 2147483648
      %v1356 = vmul.f32 %v1355, 1.442695
      %v1357 = vpow.pop %v1356
      %v1358 = vadd.f32 %v1357, 1.0
      %v1359 = vrcp.pop %v1358
      %v1360 = vmul.f32 1.0, %v1359
      %v1361 = vxor.u32 %v1352, 2147483648
      %v1362 = vmul.f32 %v1361, 1.442695
      %v1363 = vpow.pop %v1362
      %v1364 = vadd.f32 %v1363, 1.0
      %v1365 = vrcp.pop %v1364
      %v1366 = vmul.f32 1.0, %v1365
      %v1367 = vtanh.pop %v1353
      %v1368 = vxor.u32 %v1354, 2147483648
      %v1369 = vmul.f32 %v1368, 1.442695
      %v1370 = vpow.pop %v1369
      %v1371 = vadd.f32 %v1370, 1.0
      %v1372 = vrcp.pop %v1371
      %v1373 = vmul.f32 1.0, %v1372
      %v1374 = vmul.f32 %v1366, %v1205
      %v1375 = vmul.f32 %v1360, %v1367
      %v1376 = vadd.f32 %v1374, %v1375
      %v1377 = vtanh.pop %v1376
      %v1378 = vmul.f32 %v1373, %v1377
      %s1379 = sadd.s32 %s68, 4
      %v1380 = vstv %s1379
      %vm1381 = vcmp.lt.s32.totalorder %v1380, %v476
      %v1382 = vsel %vm1381, 1, 0
      %1383 = vset.pattern.permute.xlu0 0
      %1384 = vperm.xlu0 %1383, %v1382
      %v1385 = vpop.permute.xlu0 %1384
      %vm1386 = vcmp.eq.s32.totalorder %v1385, 1
      %v1387 = vsel %vm1386, %v1378, %v1204
      %v1388 = vsel %vm1386, %v1376, %v1205
      %v1389 = vsel %vm1386, %v1378, 0.0
      %s1390 = scalar_lea.vmem [#allocation12], 32
      %1391 = vst [vmem:[%s1390] sm:$0xff] %v1389
      %1392 = vmatprep.subr.mxu0 %v473
      %1393 = vmatpush1.msra.mxu0 %v472
      %1394 = vmatprep.subr.mxu0 %v469
      %1395 = vmatpush1.msra.mxu0 %v468
      %1396 = vmatprep.subr.mxu0 %v465
      %1397 = vmatpush1.msra.mxu0 %v464
      %1398 = vmatprep.subr.mxu0 %v461
      %1399 = vmatpush1.msra.mxu0 %v460
      %1400 = vmatprep.subr.mxu0 %v457
      %1401 = vmatpush1.msra.mxu0 %v456
      %1402 = vmatprep.subr.mxu0 %v453
      %1403 = vmatpush1.msra.mxu0 %v452
      %1404 = vmatprep.subr.mxu0 %v449
      %1405 = vmatpush1.msra.mxu0 %v448
      %1406 = vmatprep.subr.mxu0 %v445
      %1407 = vmatpush1.msra.mxu0 %v444
      %1408 = vmatprep.subr.mxu0 %v441
      %1409 = vmatpush1.msra.mxu0 %v440
      %1410 = vmatprep.subr.mxu0 %v437
      %1411 = vmatpush1.msra.mxu0 %v436
      %1412 = vmatprep.subr.mxu0 %v433
      %1413 = vmatpush1.msra.mxu0 %v432
      %1414 = vmatprep.subr.mxu0 %v429
      %1415 = vmatpush1.msra.mxu0 %v428
      %1416 = vmatprep.subr.mxu0 %v425
      %1417 = vmatpush1.msra.mxu0 %v424
      %1418 = vmatprep.subr.mxu0 %v421
      %1419 = vmatpush1.msra.mxu0 %v420
      %1420 = vmatprep.subr.mxu0 %v417
      %1421 = vmatpush1.msra.mxu0 %v416
      %1422 = vmatprep.subr.mxu0 %v413
      %1423 = vmatpush1.msra.mxu0 %v412
      %1424 = vmatprep.subr.mxu0 0.0
      %1425 = vmatpush2.msra.mxu0 0.0
      %1426 = vmatprep.subr.mxu0 0.0
      %1427 = vmatpush2.msra.mxu0 0.0
      %1428 = vmatprep.subr.mxu0 0.0
      %1429 = vmatpush2.msra.mxu0 0.0
      %1430 = vmatprep.subr.mxu0 0.0
      %1431 = vmatpush2.msra.mxu0 0.0
      %1432 = vmatprep.subr.mxu0 0.0
      %1433 = vmatpush2.msra.mxu0 0.0
      %1434 = vmatprep.subr.mxu0 0.0
      %1435 = vmatpush2.msra.mxu0 0.0
      %1436 = vmatprep.subr.mxu0 0.0
      %1437 = vmatpush2.msra.mxu0 0.0
      %1438 = vmatprep.subr.mxu0 0.0
      %1439 = vmatpush2.msra.mxu0 0.0
      %1440 = vmatprep.subr.mxu0 0.0
      %1441 = vmatpush2.msra.mxu0 0.0
      %1442 = vmatprep.subr.mxu0 0.0
      %1443 = vmatpush2.msra.mxu0 0.0
      %1444 = vmatprep.subr.mxu0 0.0
      %1445 = vmatpush2.msra.mxu0 0.0
      %1446 = vmatprep.subr.mxu0 0.0
      %1447 = vmatpush2.msra.mxu0 0.0
      %1448 = vmatprep.subr.mxu0 0.0
      %1449 = vmatpush2.msra.mxu0 0.0
      %1450 = vmatprep.subr.mxu0 0.0
      %1451 = vmatpush2.msra.mxu0 0.0
      %1452 = vmatprep.subr.mxu0 0.0
      %1453 = vmatpush2.msra.mxu0 0.0
      %1454 = vmatprep.subr.mxu0 0.0
      %1455 = vmatpush2.msra.mxu0 0.0
      %1456 = vmatprep.mubr.f32.mxu0 0.0
      %1457 = vmatmul.mubr.f32.gmra.mxu0 %v1387
      %v1458 = vpop.f32.mrf.mxu0
      %v1459 = vadd.f32 0.0, %v1458
      %v1460 = vpop.f32.mrf.mxu0
      %v1461 = vadd.f32 0.0, %v1460
      %1462 = vdwg.mxu0
      %1463 = vmatprep.subr.mxu0 %v475
      %1464 = vmatpush1.msra.mxu0 %v474
      %1465 = vmatprep.subr.mxu0 %v471
      %1466 = vmatpush1.msra.mxu0 %v470
      %1467 = vmatprep.subr.mxu0 %v467
      %1468 = vmatpush1.msra.mxu0 %v466
      %1469 = vmatprep.subr.mxu0 %v463
      %1470 = vmatpush1.msra.mxu0 %v462
      %1471 = vmatprep.subr.mxu0 %v459
      %1472 = vmatpush1.msra.mxu0 %v458
      %1473 = vmatprep.subr.mxu0 %v455
      %1474 = vmatpush1.msra.mxu0 %v454
      %1475 = vmatprep.subr.mxu0 %v451
      %1476 = vmatpush1.msra.mxu0 %v450
      %1477 = vmatprep.subr.mxu0 %v447
      %1478 = vmatpush1.msra.mxu0 %v446
      %1479 = vmatprep.subr.mxu0 %v443
      %1480 = vmatpush1.msra.mxu0 %v442
      %1481 = vmatprep.subr.mxu0 %v439
      %1482 = vmatpush1.msra.mxu0 %v438
      %1483 = vmatprep.subr.mxu0 %v435
      %1484 = vmatpush1.msra.mxu0 %v434
      %1485 = vmatprep.subr.mxu0 %v431
      %1486 = vmatpush1.msra.mxu0 %v430
      %1487 = vmatprep.subr.mxu0 %v427
      %1488 = vmatpush1.msra.mxu0 %v426
      %1489 = vmatprep.subr.mxu0 %v423
      %1490 = vmatpush1.msra.mxu0 %v422
      %1491 = vmatprep.subr.mxu0 %v419
      %1492 = vmatpush1.msra.mxu0 %v418
      %1493 = vmatprep.subr.mxu0 %v415
      %1494 = vmatpush1.msra.mxu0 %v414
      %1495 = vmatprep.subr.mxu0 0.0
      %1496 = vmatpush2.msra.mxu0 0.0
      %1497 = vmatprep.subr.mxu0 0.0
      %1498 = vmatpush2.msra.mxu0 0.0
      %1499 = vmatprep.subr.mxu0 0.0
      %1500 = vmatpush2.msra.mxu0 0.0
      %1501 = vmatprep.subr.mxu0 0.0
      %1502 = vmatpush2.msra.mxu0 0.0
      %1503 = vmatprep.subr.mxu0 0.0
      %1504 = vmatpush2.msra.mxu0 0.0
      %1505 = vmatprep.subr.mxu0 0.0
      %1506 = vmatpush2.msra.mxu0 0.0
      %1507 = vmatprep.subr.mxu0 0.0
      %1508 = vmatpush2.msra.mxu0 0.0
      %1509 = vmatprep.subr.mxu0 0.0
      %1510 = vmatpush2.msra.mxu0 0.0
      %1511 = vmatprep.subr.mxu0 0.0
      %1512 = vmatpush2.msra.mxu0 0.0
      %1513 = vmatprep.subr.mxu0 0.0
      %1514 = vmatpush2.msra.mxu0 0.0
      %1515 = vmatprep.subr.mxu0 0.0
      %1516 = vmatpush2.msra.mxu0 0.0
      %1517 = vmatprep.subr.mxu0 0.0
      %1518 = vmatpush2.msra.mxu0 0.0
      %1519 = vmatprep.subr.mxu0 0.0
      %1520 = vmatpush2.msra.mxu0 0.0
      %1521 = vmatprep.subr.mxu0 0.0
      %1522 = vmatpush2.msra.mxu0 0.0
      %1523 = vmatprep.subr.mxu0 0.0
      %1524 = vmatpush2.msra.mxu0 0.0
      %1525 = vmatprep.subr.mxu0 0.0
      %1526 = vmatpush2.msra.mxu0 0.0
      %1527 = vmatprep.mubr.f32.mxu0 0.0
      %1528 = vmatmul.mubr.f32.gmra.mxu0 %v1387
      %v1529 = vpop.f32.mrf.mxu0
      %v1530 = vadd.f32 0.0, %v1529
      %v1531 = vpop.f32.mrf.mxu0
      %v1532 = vadd.f32 0.0, %v1531
      %1533 = vdwg.mxu0
      %v1534 = vadd.f32 %v283, %v1459
      %v1535 = vadd.f32 %v285, %v1461
      %v1536 = vadd.f32 %v396, %v1530
      %v1537 = vadd.f32 %v398, %v1532
      %v1538 = vxor.u32 %v1534, 2147483648
      %v1539 = vmul.f32 %v1538, 1.442695
      %v1540 = vpow.pop %v1539
      %v1541 = vadd.f32 %v1540, 1.0
      %v1542 = vrcp.pop %v1541
      %v1543 = vmul.f32 1.0, %v1542
      %v1544 = vxor.u32 %v1535, 2147483648
      %v1545 = vmul.f32 %v1544, 1.442695
      %v1546 = vpow.pop %v1545
      %v1547 = vadd.f32 %v1546, 1.0
      %v1548 = vrcp.pop %v1547
      %v1549 = vmul.f32 1.0, %v1548
      %v1550 = vtanh.pop %v1536
      %v1551 = vxor.u32 %v1537, 2147483648
      %v1552 = vmul.f32 %v1551, 1.442695
      %v1553 = vpow.pop %v1552
      %v1554 = vadd.f32 %v1553, 1.0
      %v1555 = vrcp.pop %v1554
      %v1556 = vmul.f32 1.0, %v1555
      %v1557 = vmul.f32 %v1549, %v1388
      %v1558 = vmul.f32 %v1543, %v1550
      %v1559 = vadd.f32 %v1557, %v1558
      %v1560 = vtanh.pop %v1559
      %v1561 = vmul.f32 %v1556, %v1560
      %s1562 = sadd.s32 %s68, 5
      %v1563 = vstv %s1562
      %vm1564 = vcmp.lt.s32.totalorder %v1563, %v476
      %v1565 = vsel %vm1564, 1, 0
      %1566 = vset.pattern.permute.xlu0 0
      %1567 = vperm.xlu0 %1566, %v1565
      %v1568 = vpop.permute.xlu0 %1567
      %vm1569 = vcmp.eq.s32.totalorder %v1568, 1
      %v1570 = vsel %vm1569, %v1561, %v1387
      %v1571 = vsel %vm1569, %v1559, %v1388
      %v1572 = vsel %vm1569, %v1561, 0.0
      %s1573 = scalar_lea.vmem [#allocation12], 40
      %1574 = vst [vmem:[%s1573] sm:$0xff] %v1572
      %1575 = vmatprep.subr.mxu0 %v473
      %1576 = vmatpush1.msra.mxu0 %v472
      %1577 = vmatprep.subr.mxu0 %v469
      %1578 = vmatpush1.msra.mxu0 %v468
      %1579 = vmatprep.subr.mxu0 %v465
      %1580 = vmatpush1.msra.mxu0 %v464
      %1581 = vmatprep.subr.mxu0 %v461
      %1582 = vmatpush1.msra.mxu0 %v460
      %1583 = vmatprep.subr.mxu0 %v457
      %1584 = vmatpush1.msra.mxu0 %v456
      %1585 = vmatprep.subr.mxu0 %v453
      %1586 = vmatpush1.msra.mxu0 %v452
      %1587 = vmatprep.subr.mxu0 %v449
      %1588 = vmatpush1.msra.mxu0 %v448
      %1589 = vmatprep.subr.mxu0 %v445
      %1590 = vmatpush1.msra.mxu0 %v444
      %1591 = vmatprep.subr.mxu0 %v441
      %1592 = vmatpush1.msra.mxu0 %v440
      %1593 = vmatprep.subr.mxu0 %v437
      %1594 = vmatpush1.msra.mxu0 %v436
      %1595 = vmatprep.subr.mxu0 %v433
      %1596 = vmatpush1.msra.mxu0 %v432
      %1597 = vmatprep.subr.mxu0 %v429
      %1598 = vmatpush1.msra.mxu0 %v428
      %1599 = vmatprep.subr.mxu0 %v425
      %1600 = vmatpush1.msra.mxu0 %v424
      %1601 = vmatprep.subr.mxu0 %v421
      %1602 = vmatpush1.msra.mxu0 %v420
      %1603 = vmatprep.subr.mxu0 %v417
      %1604 = vmatpush1.msra.mxu0 %v416
      %1605 = vmatprep.subr.mxu0 %v413
      %1606 = vmatpush1.msra.mxu0 %v412
      %1607 = vmatprep.subr.mxu0 0.0
      %1608 = vmatpush2.msra.mxu0 0.0
      %1609 = vmatprep.subr.mxu0 0.0
      %1610 = vmatpush2.msra.mxu0 0.0
      %1611 = vmatprep.subr.mxu0 0.0
      %1612 = vmatpush2.msra.mxu0 0.0
      %1613 = vmatprep.subr.mxu0 0.0
      %1614 = vmatpush2.msra.mxu0 0.0
      %1615 = vmatprep.subr.mxu0 0.0
      %1616 = vmatpush2.msra.mxu0 0.0
      %1617 = vmatprep.subr.mxu0 0.0
      %1618 = vmatpush2.msra.mxu0 0.0
      %1619 = vmatprep.subr.mxu0 0.0
      %1620 = vmatpush2.msra.mxu0 0.0
      %1621 = vmatprep.subr.mxu0 0.0
      %1622 = vmatpush2.msra.mxu0 0.0
      %1623 = vmatprep.subr.mxu0 0.0
      %1624 = vmatpush2.msra.mxu0 0.0
      %1625 = vmatprep.subr.mxu0 0.0
      %1626 = vmatpush2.msra.mxu0 0.0
      %1627 = vmatprep.subr.mxu0 0.0
      %1628 = vmatpush2.msra.mxu0 0.0
      %1629 = vmatprep.subr.mxu0 0.0
      %1630 = vmatpush2.msra.mxu0 0.0
      %1631 = vmatprep.subr.mxu0 0.0
      %1632 = vmatpush2.msra.mxu0 0.0
      %1633 = vmatprep.subr.mxu0 0.0
      %1634 = vmatpush2.msra.mxu0 0.0
      %1635 = vmatprep.subr.mxu0 0.0
      %1636 = vmatpush2.msra.mxu0 0.0
      %1637 = vmatprep.subr.mxu0 0.0
      %1638 = vmatpush2.msra.mxu0 0.0
      %1639 = vmatprep.mubr.f32.mxu0 0.0
      %1640 = vmatmul.mubr.f32.gmra.mxu0 %v1570
      %v1641 = vpop.f32.mrf.mxu0
      %v1642 = vadd.f32 0.0, %v1641
      %v1643 = vpop.f32.mrf.mxu0
      %v1644 = vadd.f32 0.0, %v1643
      %1645 = vdwg.mxu0
      %1646 = vmatprep.subr.mxu0 %v475
      %1647 = vmatpush1.msra.mxu0 %v474
      %1648 = vmatprep.subr.mxu0 %v471
      %1649 = vmatpush1.msra.mxu0 %v470
      %1650 = vmatprep.subr.mxu0 %v467
      %1651 = vmatpush1.msra.mxu0 %v466
      %1652 = vmatprep.subr.mxu0 %v463
      %1653 = vmatpush1.msra.mxu0 %v462
      %1654 = vmatprep.subr.mxu0 %v459
      %1655 = vmatpush1.msra.mxu0 %v458
      %1656 = vmatprep.subr.mxu0 %v455
      %1657 = vmatpush1.msra.mxu0 %v454
      %1658 = vmatprep.subr.mxu0 %v451
      %1659 = vmatpush1.msra.mxu0 %v450
      %1660 = vmatprep.subr.mxu0 %v447
      %1661 = vmatpush1.msra.mxu0 %v446
      %1662 = vmatprep.subr.mxu0 %v443
      %1663 = vmatpush1.msra.mxu0 %v442
      %1664 = vmatprep.subr.mxu0 %v439
      %1665 = vmatpush1.msra.mxu0 %v438
      %1666 = vmatprep.subr.mxu0 %v435
      %1667 = vmatpush1.msra.mxu0 %v434
      %1668 = vmatprep.subr.mxu0 %v431
      %1669 = vmatpush1.msra.mxu0 %v430
      %1670 = vmatprep.subr.mxu0 %v427
      %1671 = vmatpush1.msra.mxu0 %v426
      %1672 = vmatprep.subr.mxu0 %v423
      %1673 = vmatpush1.msra.mxu0 %v422
      %1674 = vmatprep.subr.mxu0 %v419
      %1675 = vmatpush1.msra.mxu0 %v418
      %1676 = vmatprep.subr.mxu0 %v415
      %1677 = vmatpush1.msra.mxu0 %v414
      %1678 = vmatprep.subr.mxu0 0.0
      %1679 = vmatpush2.msra.mxu0 0.0
      %1680 = vmatprep.subr.mxu0 0.0
      %1681 = vmatpush2.msra.mxu0 0.0
      %1682 = vmatprep.subr.mxu0 0.0
      %1683 = vmatpush2.msra.mxu0 0.0
      %1684 = vmatprep.subr.mxu0 0.0
      %1685 = vmatpush2.msra.mxu0 0.0
      %1686 = vmatprep.subr.mxu0 0.0
      %1687 = vmatpush2.msra.mxu0 0.0
      %1688 = vmatprep.subr.mxu0 0.0
      %1689 = vmatpush2.msra.mxu0 0.0
      %1690 = vmatprep.subr.mxu0 0.0
      %1691 = vmatpush2.msra.mxu0 0.0
      %1692 = vmatprep.subr.mxu0 0.0
      %1693 = vmatpush2.msra.mxu0 0.0
      %1694 = vmatprep.subr.mxu0 0.0
      %1695 = vmatpush2.msra.mxu0 0.0
      %1696 = vmatprep.subr.mxu0 0.0
      %1697 = vmatpush2.msra.mxu0 0.0
      %1698 = vmatprep.subr.mxu0 0.0
      %1699 = vmatpush2.msra.mxu0 0.0
      %1700 = vmatprep.subr.mxu0 0.0
      %1701 = vmatpush2.msra.mxu0 0.0
      %1702 = vmatprep.subr.mxu0 0.0
      %1703 = vmatpush2.msra.mxu0 0.0
      %1704 = vmatprep.subr.mxu0 0.0
      %1705 = vmatpush2.msra.mxu0 0.0
      %1706 = vmatprep.subr.mxu0 0.0
      %1707 = vmatpush2.msra.mxu0 0.0
      %1708 = vmatprep.subr.mxu0 0.0
      %1709 = vmatpush2.msra.mxu0 0.0
      %1710 = vmatprep.mubr.f32.mxu0 0.0
      %1711 = vmatmul.mubr.f32.gmra.mxu0 %v1570
      %v1712 = vpop.f32.mrf.mxu0
      %v1713 = vadd.f32 0.0, %v1712
      %v1714 = vpop.f32.mrf.mxu0
      %v1715 = vadd.f32 0.0, %v1714
      %1716 = vdwg.mxu0
      %v1717 = vadd.f32 %v289, %v1642
      %v1718 = vadd.f32 %v291, %v1644
      %v1719 = vadd.f32 %v402, %v1713
      %v1720 = vadd.f32 %v404, %v1715
      %v1721 = vxor.u32 %v1717, 2147483648
      %v1722 = vmul.f32 %v1721, 1.442695
      %v1723 = vpow.pop %v1722
      %v1724 = vadd.f32 %v1723, 1.0
      %v1725 = vrcp.pop %v1724
      %v1726 = vmul.f32 1.0, %v1725
      %v1727 = vxor.u32 %v1718, 2147483648
      %v1728 = vmul.f32 %v1727, 1.442695
      %v1729 = vpow.pop %v1728
      %v1730 = vadd.f32 %v1729, 1.0
      %v1731 = vrcp.pop %v1730
      %v1732 = vmul.f32 1.0, %v1731
      %v1733 = vtanh.pop %v1719
      %v1734 = vxor.u32 %v1720, 2147483648
      %v1735 = vmul.f32 %v1734, 1.442695
      %v1736 = vpow.pop %v1735
      %v1737 = vadd.f32 %v1736, 1.0
      %v1738 = vrcp.pop %v1737
      %v1739 = vmul.f32 1.0, %v1738
      %v1740 = vmul.f32 %v1732, %v1571
      %v1741 = vmul.f32 %v1726, %v1733
      %v1742 = vadd.f32 %v1740, %v1741
      %v1743 = vtanh.pop %v1742
      %v1744 = vmul.f32 %v1739, %v1743
      %s1745 = sadd.s32 %s68, 6
      %v1746 = vstv %s1745
      %vm1747 = vcmp.lt.s32.totalorder %v1746, %v476
      %v1748 = vsel %vm1747, 1, 0
      %1749 = vset.pattern.permute.xlu0 0
      %1750 = vperm.xlu0 %1749, %v1748
      %v1751 = vpop.permute.xlu0 %1750
      %vm1752 = vcmp.eq.s32.totalorder %v1751, 1
      %v1753 = vsel %vm1752, %v1744, %v1570
      %v1754 = vsel %vm1752, %v1742, %v1571
      %v1755 = vsel %vm1752, %v1744, 0.0
      %s1756 = scalar_lea.vmem [#allocation12], 48
      %1757 = vst [vmem:[%s1756] sm:$0xff] %v1755
      %1758 = vmatprep.subr.mxu0 %v473
      %1759 = vmatpush1.msra.mxu0 %v472
      %1760 = vmatprep.subr.mxu0 %v469
      %1761 = vmatpush1.msra.mxu0 %v468
      %1762 = vmatprep.subr.mxu0 %v465
      %1763 = vmatpush1.msra.mxu0 %v464
      %1764 = vmatprep.subr.mxu0 %v461
      %1765 = vmatpush1.msra.mxu0 %v460
      %1766 = vmatprep.subr.mxu0 %v457
      %1767 = vmatpush1.msra.mxu0 %v456
      %1768 = vmatprep.subr.mxu0 %v453
      %1769 = vmatpush1.msra.mxu0 %v452
      %1770 = vmatprep.subr.mxu0 %v449
      %1771 = vmatpush1.msra.mxu0 %v448
      %1772 = vmatprep.subr.mxu0 %v445
      %1773 = vmatpush1.msra.mxu0 %v444
      %1774 = vmatprep.subr.mxu0 %v441
      %1775 = vmatpush1.msra.mxu0 %v440
      %1776 = vmatprep.subr.mxu0 %v437
      %1777 = vmatpush1.msra.mxu0 %v436
      %1778 = vmatprep.subr.mxu0 %v433
      %1779 = vmatpush1.msra.mxu0 %v432
      %1780 = vmatprep.subr.mxu0 %v429
      %1781 = vmatpush1.msra.mxu0 %v428
      %1782 = vmatprep.subr.mxu0 %v425
      %1783 = vmatpush1.msra.mxu0 %v424
      %1784 = vmatprep.subr.mxu0 %v421
      %1785 = vmatpush1.msra.mxu0 %v420
      %1786 = vmatprep.subr.mxu0 %v417
      %1787 = vmatpush1.msra.mxu0 %v416
      %1788 = vmatprep.subr.mxu0 %v413
      %1789 = vmatpush1.msra.mxu0 %v412
      %1790 = vmatprep.subr.mxu0 0.0
      %1791 = vmatpush2.msra.mxu0 0.0
      %1792 = vmatprep.subr.mxu0 0.0
      %1793 = vmatpush2.msra.mxu0 0.0
      %1794 = vmatprep.subr.mxu0 0.0
      %1795 = vmatpush2.msra.mxu0 0.0
      %1796 = vmatprep.subr.mxu0 0.0
      %1797 = vmatpush2.msra.mxu0 0.0
      %1798 = vmatprep.subr.mxu0 0.0
      %1799 = vmatpush2.msra.mxu0 0.0
      %1800 = vmatprep.subr.mxu0 0.0
      %1801 = vmatpush2.msra.mxu0 0.0
      %1802 = vmatprep.subr.mxu0 0.0
      %1803 = vmatpush2.msra.mxu0 0.0
      %1804 = vmatprep.subr.mxu0 0.0
      %1805 = vmatpush2.msra.mxu0 0.0
      %1806 = vmatprep.subr.mxu0 0.0
      %1807 = vmatpush2.msra.mxu0 0.0
      %1808 = vmatprep.subr.mxu0 0.0
      %1809 = vmatpush2.msra.mxu0 0.0
      %1810 = vmatprep.subr.mxu0 0.0
      %1811 = vmatpush2.msra.mxu0 0.0
      %1812 = vmatprep.subr.mxu0 0.0
      %1813 = vmatpush2.msra.mxu0 0.0
      %1814 = vmatprep.subr.mxu0 0.0
      %1815 = vmatpush2.msra.mxu0 0.0
      %1816 = vmatprep.subr.mxu0 0.0
      %1817 = vmatpush2.msra.mxu0 0.0
      %1818 = vmatprep.subr.mxu0 0.0
      %1819 = vmatpush2.msra.mxu0 0.0
      %1820 = vmatprep.subr.mxu0 0.0
      %1821 = vmatpush2.msra.mxu0 0.0
      %1822 = vmatprep.mubr.f32.mxu0 0.0
      %1823 = vmatmul.mubr.f32.gmra.mxu0 %v1753
      %v1824 = vpop.f32.mrf.mxu0
      %v1825 = vadd.f32 0.0, %v1824
      %v1826 = vpop.f32.mrf.mxu0
      %v1827 = vadd.f32 0.0, %v1826
      %1828 = vdwg.mxu0
      %1829 = vmatprep.subr.mxu0 %v475
      %1830 = vmatpush1.msra.mxu0 %v474
      %1831 = vmatprep.subr.mxu0 %v471
      %1832 = vmatpush1.msra.mxu0 %v470
      %1833 = vmatprep.subr.mxu0 %v467
      %1834 = vmatpush1.msra.mxu0 %v466
      %1835 = vmatprep.subr.mxu0 %v463
      %1836 = vmatpush1.msra.mxu0 %v462
      %1837 = vmatprep.subr.mxu0 %v459
      %1838 = vmatpush1.msra.mxu0 %v458
      %1839 = vmatprep.subr.mxu0 %v455
      %1840 = vmatpush1.msra.mxu0 %v454
      %1841 = vmatprep.subr.mxu0 %v451
      %1842 = vmatpush1.msra.mxu0 %v450
      %1843 = vmatprep.subr.mxu0 %v447
      %1844 = vmatpush1.msra.mxu0 %v446
      %1845 = vmatprep.subr.mxu0 %v443
      %1846 = vmatpush1.msra.mxu0 %v442
      %1847 = vmatprep.subr.mxu0 %v439
      %1848 = vmatpush1.msra.mxu0 %v438
      %1849 = vmatprep.subr.mxu0 %v435
      %1850 = vmatpush1.msra.mxu0 %v434
      %1851 = vmatprep.subr.mxu0 %v431
      %1852 = vmatpush1.msra.mxu0 %v430
      %1853 = vmatprep.subr.mxu0 %v427
      %1854 = vmatpush1.msra.mxu0 %v426
      %1855 = vmatprep.subr.mxu0 %v423
      %1856 = vmatpush1.msra.mxu0 %v422
      %1857 = vmatprep.subr.mxu0 %v419
      %1858 = vmatpush1.msra.mxu0 %v418
      %1859 = vmatprep.subr.mxu0 %v415
      %1860 = vmatpush1.msra.mxu0 %v414
      %1861 = vmatprep.subr.mxu0 0.0
      %1862 = vmatpush2.msra.mxu0 0.0
      %1863 = vmatprep.subr.mxu0 0.0
      %1864 = vmatpush2.msra.mxu0 0.0
      %1865 = vmatprep.subr.mxu0 0.0
      %1866 = vmatpush2.msra.mxu0 0.0
      %1867 = vmatprep.subr.mxu0 0.0
      %1868 = vmatpush2.msra.mxu0 0.0
      %1869 = vmatprep.subr.mxu0 0.0
      %1870 = vmatpush2.msra.mxu0 0.0
      %1871 = vmatprep.subr.mxu0 0.0
      %1872 = vmatpush2.msra.mxu0 0.0
      %1873 = vmatprep.subr.mxu0 0.0
      %1874 = vmatpush2.msra.mxu0 0.0
      %1875 = vmatprep.subr.mxu0 0.0
      %1876 = vmatpush2.msra.mxu0 0.0
      %1877 = vmatprep.subr.mxu0 0.0
      %1878 = vmatpush2.msra.mxu0 0.0
      %1879 = vmatprep.subr.mxu0 0.0
      %1880 = vmatpush2.msra.mxu0 0.0
      %1881 = vmatprep.subr.mxu0 0.0
      %1882 = vmatpush2.msra.mxu0 0.0
      %1883 = vmatprep.subr.mxu0 0.0
      %1884 = vmatpush2.msra.mxu0 0.0
      %1885 = vmatprep.subr.mxu0 0.0
      %1886 = vmatpush2.msra.mxu0 0.0
      %1887 = vmatprep.subr.mxu0 0.0
      %1888 = vmatpush2.msra.mxu0 0.0
      %1889 = vmatprep.subr.mxu0 0.0
      %1890 = vmatpush2.msra.mxu0 0.0
      %1891 = vmatprep.subr.mxu0 0.0
      %1892 = vmatpush2.msra.mxu0 0.0
      %1893 = vmatprep.mubr.f32.mxu0 0.0
      %1894 = vmatmul.mubr.f32.gmra.mxu0 %v1753
      %v1895 = vpop.f32.mrf.mxu0
      %v1896 = vadd.f32 0.0, %v1895
      %v1897 = vpop.f32.mrf.mxu0
      %v1898 = vadd.f32 0.0, %v1897
      %1899 = vdwg.mxu0
      %v1900 = vadd.f32 %v295, %v1825
      %v1901 = vadd.f32 %v297, %v1827
      %v1902 = vadd.f32 %v408, %v1896
      %v1903 = vadd.f32 %v410, %v1898
      %v1904 = vxor.u32 %v1900, 2147483648
      %v1905 = vmul.f32 %v1904, 1.442695
      %v1906 = vpow.pop %v1905
      %v1907 = vadd.f32 %v1906, 1.0
      %v1908 = vrcp.pop %v1907
      %v1909 = vmul.f32 1.0, %v1908
      %v1910 = vxor.u32 %v1901, 2147483648
      %v1911 = vmul.f32 %v1910, 1.442695
      %v1912 = vpow.pop %v1911
      %v1913 = vadd.f32 %v1912, 1.0
      %v1914 = vrcp.pop %v1913
      %v1915 = vmul.f32 1.0, %v1914
      %v1916 = vtanh.pop %v1902
      %v1917 = vxor.u32 %v1903, 2147483648
      %v1918 = vmul.f32 %v1917, 1.442695
      %v1919 = vpow.pop %v1918
      %v1920 = vadd.f32 %v1919, 1.0
      %v1921 = vrcp.pop %v1920
      %v1922 = vmul.f32 1.0, %v1921
      %v1923 = vmul.f32 %v1915, %v1754
      %v1924 = vmul.f32 %v1909, %v1916
      %v1925 = vadd.f32 %v1923, %v1924
      %v1926 = vtanh.pop %v1925
      %v1927 = vmul.f32 %v1922, %v1926
      %s1928 = sadd.s32 %s68, 7
      %v1929 = vstv %s1928
      %vm1930 = vcmp.lt.s32.totalorder %v1929, %v476
      %v1931 = vsel %vm1930, 1, 0
      %1932 = vset.pattern.permute.xlu0 0
      %1933 = vperm.xlu0 %1932, %v1931
      %v1934 = vpop.permute.xlu0 %1933
      %vm1935 = vcmp.eq.s32.totalorder %v1934, 1
      %v1936 = vsel %vm1935, %v1927, %v1753
      %v1937 = vsel %vm1935, %v1925, %v1754
      %v1938 = vsel %vm1935, %v1927, 0.0
      %s1939 = scalar_lea.vmem [#allocation12], 56
      %1940 = vst [vmem:[%s1939] sm:$0xff] %v1938
      %1941 = vst [vmem:[#allocation2] sm:$0xff] %v1936
      %1942 = vst [vmem:[#allocation3] sm:$0xff] %v1937
    $region45: #{tpu_custom_call.1} parent=1 // pred_fallthru
      _
    %v1943 = vld [vmem:[#allocation2] sm:$0xff]
    %1944 = vst [vmem:[#allocation13] sm:$0xff] %v1943
    %v1945 = vld [vmem:[#allocation3] sm:$0xff]
    %1946 = vst [vmem:[#allocation15] sm:$0xff] %v1945
    // Predicated region
    $region46: #{tpu_custom_call.1} parent=1 // pred_check
      _
    $region47: #{tpu_custom_call.1} parent=1 // pred_check_branch
      %1948 = sbr.rel (0) target = $region49
    $region48: #{tpu_custom_call.1} parent=1 // pred_region
      %s1950 = ssub.s32 1024, 1024
      %1951 = vsyncadd [#allocation8], %s1950
      %s1952 = sshll.u32 [#allocation12], 4
      %s1953 = int_to_ptr.vmem [resolvable:$true] %s1952
      %1958 = dma.vmem_to_hbm [thread:$0]  %s1953, 1024, %s6, [#allocation8], 128, 128, 8
    $region49: #{tpu_custom_call.1} parent=1 // pred_fallthru
      _
    // Predicated region
    $region50: #{tpu_custom_call.1} parent=1 // pred_check
      _
    $region51: #{tpu_custom_call.1} parent=1 // pred_check_branch
      %1960 = sbr.rel (0) target = $region53
    $region52: #{tpu_custom_call.1} parent=1 // pred_region
      %s1962 = ssub.s32 128, 128
      %1963 = vsyncadd [#allocation14], %s1962
      %s1965 = sshll.u32 [#allocation13], 4
      %s1966 = int_to_ptr.vmem [resolvable:$true] %s1965
      %1968 = dma.vmem_to_hbm [thread:$0]  %s1966, 128, %s7, [#allocation14]
    $region53: #{tpu_custom_call.1} parent=1 // pred_fallthru
      _
    // Predicated region
    $region54: #{tpu_custom_call.1} parent=1 // pred_check
      _
    $region55: #{tpu_custom_call.1} parent=1 // pred_check_branch
      %1970 = sbr.rel (0) target = $region57
    $region56: #{tpu_custom_call.1} parent=1 // pred_region
      %s1972 = ssub.s32 128, 128
      %1973 = vsyncadd [#allocation14], %s1972
      %s1975 = sshll.u32 [#allocation15], 4
      %s1976 = int_to_ptr.vmem [resolvable:$true] %s1975
      %1978 = dma.vmem_to_hbm [thread:$0]  %s1976, 128, %s8, [#allocation14]
    $region57: #{tpu_custom_call.1} parent=1 // pred_fallthru
      _
    // Predicated region
    $region58: #{tpu_custom_call.1} parent=1 // pred_check
      _
    $region59: #{tpu_custom_call.1} parent=1 // pred_check_branch
      %1980 = sbr.rel (0) target = $region61
    $region60: #{tpu_custom_call.1} parent=1 // pred_region
      %1981 = dma.done [#allocation8], 1024
    $region61: #{tpu_custom_call.1} parent=1 // pred_fallthru
      _
    // Predicated region
    $region62: #{tpu_custom_call.1} parent=1 // pred_check
      _
    $region63: #{tpu_custom_call.1} parent=1 // pred_check_branch
      %1983 = sbr.rel (0) target = $region65
    $region64: #{tpu_custom_call.1} parent=1 // pred_region
      %1984 = dma.done [#allocation14], 128
    $region65: #{tpu_custom_call.1} parent=1 // pred_fallthru
      _
    // Predicated region
    $region66: #{tpu_custom_call.1} parent=1 // pred_check
      _
    $region67: #{tpu_custom_call.1} parent=1 // pred_check_branch
      %1986 = sbr.rel (0) target = $region69
    $region68: #{tpu_custom_call.1} parent=1 // pred_region
      %1987 = dma.done [#allocation14], 128
    $region69: #{tpu_custom_call.1} parent=1 // pred_fallthru
      _
    %1988 = vsyncpa [#allocation7], 1
    %1989 = vsyncpa [#allocation10], 1
    %1990 = vsyncpa [#allocation8], 1
    %1991 = vsyncpa [#allocation14], 1

</llo_original>
